<compile_context>
chip_gen: v7x
topology: tpu7x:2x2x1
jax: 0.10.0
libtpu: 0.0.40
codegen_flags: <defaults>
</compile_context>

<pallas_src>
import math
import functools
from dataclasses import dataclass

import jax
import jax.numpy as jnp
from jax.experimental import pallas as pl
from jax.experimental.pallas import tpu as pltpu


_LN_EPS = 1e-5                      # torch.nn.LayerNorm default
_GELU_C = math.sqrt(2.0 / math.pi)  # GELU(approximate='tanh') constant


# ----------------------------- in-kernel helpers ----------------------------

def _ln_f32(x, g, b):
    """LayerNorm over last dim, f32 math, eps=1e-5 (biased variance, as torch)."""
    mu = jnp.mean(x, axis=-1, keepdims=True)
    var = jnp.mean(jnp.square(x - mu), axis=-1, keepdims=True)
    return (x - mu) * jax.lax.rsqrt(var + _LN_EPS) * g + b


def _gelu_tanh(x):
    """GELU(approximate='tanh'): 0.5*x*(1 + tanh(sqrt(2/pi)*(x + 0.044715*x^3)))."""
    return 0.5 * x * (1.0 + jnp.tanh(_GELU_C * (x + 0.044715 * x * x * x)))


def _row_tile(m):
    """Largest convenient row-tile that divides m (second-last dim must be a
    multiple of 8 or the full extent)."""
    for c in (512, 256, 128, 64, 32, 16, 8):
        if m % c == 0:
            return c
    return m


# ------------------- fused attention sub-block (one per layer) --------------

def _attn_block_kernel(x_ref, g1_ref, b1_ref, wqkv_ref, bqkv_ref,
                       wproj_ref, bproj_ref, o_ref, *, n_head, scale):
    # x_ref block: (1, T, C) — one batch element per grid point.
    x = x_ref[0].astype(jnp.float32)                              # (T, C)
    T, C = x.shape
    dh = C // n_head

    # LN1
    h = _ln_f32(x, g1_ref[...].astype(jnp.float32), b1_ref[...].astype(jnp.float32))

    # Fused QKV projection: (T, C) @ (C, 3C) + (1, 3C)
    qkv = jnp.dot(h, wqkv_ref[...].astype(jnp.float32),
                  preferred_element_type=jnp.float32) + bqkv_ref[...].astype(jnp.float32)
    q = qkv[:, 0 * C:1 * C]
    k = qkv[:, 1 * C:2 * C]
    v = qkv[:, 2 * C:3 * C]

    # Causal mask (diagonal kept -> every row has at least one valid column).
    row = jax.lax.broadcasted_iota(jnp.int32, (T, T), 0)
    col = jax.lax.broadcasted_iota(jnp.int32, (T, T), 1)
    causal = col <= row

    # All heads computed in this single kernel with static column slices
    # (statically unrolled over n_head; no wrapper transposes or per-head
    # grid steps, and the concatenated output is a lane-dense (T, C) slab).
    # TODO(synk): for large n_head, vectorize the per-head loop into a single
    # batched einsum over a (H, T, dh) layout.
    heads = []
    for hh in range(n_head):
        sl = slice(hh * dh, (hh + 1) * dh)
        qh, kh, vh = q[:, sl], k[:, sl], v[:, sl]                 # (T, dh)
        s = jnp.dot(qh, kh.T, preferred_element_type=jnp.float32) * scale  # (T, T)
        s = jnp.where(causal, s, -jnp.inf)
        s = s - jnp.max(s, axis=-1, keepdims=True)
        p = jnp.exp(s)
        p = p * pl.reciprocal(jnp.sum(p, axis=-1, keepdims=True), approx=True)
        heads.append(jnp.dot(p, vh, preferred_element_type=jnp.float32))   # (T, dh)
    y = jnp.concatenate(heads, axis=-1)                           # (T, C) lane-dense

    # Output projection + residual add (residual uses pre-LN x).
    y = jnp.dot(y, wproj_ref[...].astype(jnp.float32),
                preferred_element_type=jnp.float32) + bproj_ref[...].astype(jnp.float32)
    o_ref[0] = (x + y).astype(o_ref.dtype)


def attn_block(x, g1, b1, wqkv, bqkv, wproj, bproj, n_head):
    """x: (B, T, C) -> x + attn(ln1(x)) : (B, T, C). One grid point per batch."""
    B, T, C = x.shape
    scale = 1.0 / math.sqrt(C // n_head)
    kern = functools.partial(_attn_block_kernel, n_head=n_head, scale=scale)
    return pl.pallas_call(
        kern,
        grid=(B,),
        out_shape=jax.ShapeDtypeStruct((B, T, C), x.dtype),
        in_specs=[
            pl.BlockSpec((1, T, C), lambda b: (b, 0, 0)),       # x (per batch)
            pl.BlockSpec((1, C), lambda b: (0, 0)),             # ln1 gamma
            pl.BlockSpec((1, C), lambda b: (0, 0)),             # ln1 beta
            pl.BlockSpec((C, 3 * C), lambda b: (0, 0)),         # qkv weight
            pl.BlockSpec((1, 3 * C), lambda b: (0, 0)),         # qkv bias
            pl.BlockSpec((C, C), lambda b: (0, 0)),             # proj weight
            pl.BlockSpec((1, C), lambda b: (0, 0)),             # proj bias
        ],
        out_specs=pl.BlockSpec((1, T, C), lambda b: (b, 0, 0)),
        compiler_params=pltpu.CompilerParams(dimension_semantics=("parallel",)),
    )(x, g1.reshape(1, C), b1.reshape(1, C),
      wqkv, bqkv.reshape(1, 3 * C), wproj, bproj.reshape(1, C))


# --------------------- fused MLP sub-block (one per layer) -------------------

def _mlp_block_kernel(x_ref, g2_ref, b2_ref, wfc_ref, bfc_ref,
                      wpr_ref, bpr_ref, o_ref):
    x = x_ref[...].astype(jnp.float32)                            # (tm, C)
    h = _ln_f32(x, g2_ref[...].astype(jnp.float32), b2_ref[...].astype(jnp.float32))
    h = jnp.dot(h, wfc_ref[...].astype(jnp.float32),
                preferred_element_type=jnp.float32) + bfc_ref[...].astype(jnp.float32)
    h = _gelu_tanh(h)
    h = jnp.dot(h, wpr_ref[...].astype(jnp.float32),
                preferred_element_type=jnp.float32) + bpr_ref[...].astype(jnp.float32)
    o_ref[...] = (x + h).astype(o_ref.dtype)


def mlp_block(x2d, g2, b2, wfc, bfc, wpr, bpr):
    """x2d: (B*T, C) -> x + mlp(ln2(x)), row-tiled over B*T (weights resident).
    # TODO(synk): add K-tiled accumulator path for very large n_embd."""
    M, C = x2d.shape
    Cf = wfc.shape[1]
    tm = _row_tile(M)
    return pl.pallas_call(
        _mlp_block_kernel,
        grid=(M // tm,),
        out_shape=jax.ShapeDtypeStruct((M, C), x2d.dtype),
        in_specs=[
            pl.BlockSpec((tm, C), lambda i: (i, 0)),             # x rows
            pl.BlockSpec((1, C), lambda i: (0, 0)),              # ln2 gamma
            pl.BlockSpec((1, C), lambda i: (0, 0)),              # ln2 beta
            pl.BlockSpec((C, Cf), lambda i: (0, 0)),             # fc weight
            pl.BlockSpec((1, Cf), lambda i: (0, 0)),             # fc bias
            pl.BlockSpec((Cf, C), lambda i: (0, 0)),             # proj weight
            pl.BlockSpec((1, C), lambda i: (0, 0)),              # proj bias
        ],
        out_specs=pl.BlockSpec((tm, C), lambda i: (i, 0)),
        compiler_params=pltpu.CompilerParams(dimension_semantics=("parallel",)),
    )(x2d, g2.reshape(1, C), b2.reshape(1, C),
      wfc, bfc.reshape(1, Cf), wpr, bpr.reshape(1, C))


# -------------------- fused final LayerNorm + lm_head (no bias) --------------

def _final_head_kernel(x_ref, g_ref, b_ref, w_ref, o_ref):
    x = x_ref[...].astype(jnp.float32)                            # (tm, C)
    h = _ln_f32(x, g_ref[...].astype(jnp.float32), b_ref[...].astype(jnp.float32))
    o_ref[...] = jnp.dot(h, w_ref[...].astype(jnp.float32),
                         preferred_element_type=jnp.float32).astype(o_ref.dtype)


def final_head(x2d, g, b, w_padded):
    """x2d: (B*T, C), w_padded: (C, Vp) with Vp a multiple of 128 (lane-dense
    unmasked stores). No bias operand (lm_head has bias=False)."""
    M, C = x2d.shape
    Vp = w_padded.shape[1]
    tm = _row_tile(M)
    return pl.pallas_call(
        _final_head_kernel,
        grid=(M // tm,),
        out_shape=jax.ShapeDtypeStruct((M, Vp), x2d.dtype),
        in_specs=[
            pl.BlockSpec((tm, C), lambda i: (i, 0)),
            pl.BlockSpec((1, C), lambda i: (0, 0)),
            pl.BlockSpec((1, C), lambda i: (0, 0)),
            pl.BlockSpec((C, Vp), lambda i: (0, 0)),
        ],
        out_specs=pl.BlockSpec((tm, Vp), lambda i: (i, 0)),
        compiler_params=pltpu.CompilerParams(dimension_semantics=("parallel",)),
    )(x2d, g.reshape(1, C), b.reshape(1, C), w_padded)


# ------------------------------ model (glue) ---------------------------------

@dataclass
class GPTConfig:
    vocab_size: int = 64
    block_size: int = 16
    n_layer: int = 2
    n_head: int = 2
    n_embd: int = 32


def init_params(key, cfg: GPTConfig):
    std = 0.02
    proj_std = 0.02 * (2 * cfg.n_layer) ** -0.5        # NANOGPT_SCALE_INIT
    keys = jax.random.split(key, 3 + cfg.n_layer)
    params = {
        "wte": std * jax.random.normal(keys[0], (cfg.vocab_size, cfg.n_embd), jnp.float32),
        "wpe": std * jax.random.normal(keys[1], (cfg.block_size, cfg.n_embd), jnp.float32),
        "lm_head": std * jax.random.normal(keys[2], (cfg.n_embd, cfg.vocab_size), jnp.float32),
        "lnf_g": jnp.ones((cfg.n_embd,), jnp.float32),
        "lnf_b": jnp.zeros((cfg.n_embd,), jnp.float32),
        "blocks": [],
    }
    for l in range(cfg.n_layer):
        k = jax.random.split(keys[3 + l], 4)
        blk = dict(
            ln1_g=jnp.ones((cfg.n_embd,), jnp.float32),
            ln1_b=jnp.zeros((cfg.n_embd,), jnp.float32),
            attn_w=std * jax.random.normal(k[0], (cfg.n_embd, 3 * cfg.n_embd), jnp.float32),
            attn_b=jnp.zeros((3 * cfg.n_embd,), jnp.float32),
            proj_w=proj_std * jax.random.normal(k[1], (cfg.n_embd, cfg.n_embd), jnp.float32),
            proj_b=jnp.zeros((cfg.n_embd,), jnp.float32),
            ln2_g=jnp.ones((cfg.n_embd,), jnp.float32),
            ln2_b=jnp.zeros((cfg.n_embd,), jnp.float32),
            fc_w=std * jax.random.normal(k[2], (cfg.n_embd, 4 * cfg.n_embd), jnp.float32),
            fc_b=jnp.zeros((4 * cfg.n_embd,), jnp.float32),
            mproj_w=proj_std * jax.random.normal(k[3], (4 * cfg.n_embd, cfg.n_embd), jnp.float32),
            mproj_b=jnp.zeros((cfg.n_embd,), jnp.float32),
        )
        params["blocks"].append(blk)
    return params


def gpt_forward(params, idx, cfg: GPTConfig, targets=None):
    B, T = idx.shape
    assert T <= cfg.block_size
    C, H = cfg.n_embd, cfg.n_head

    # Embedding lookups (gather) kept as plain-JAX glue.
    tok_emb = jnp.take(params["wte"], idx, axis=0)                              # (B, T, C)
    pos_emb = jnp.take(params["wpe"], jnp.arange(T, dtype=jnp.int32), axis=0)   # (T, C)
    x = tok_emb + pos_emb[None]

    for blk in params["blocks"]:
        # Fused: LN1 -> QKV -> causal MHA -> proj -> residual (1 pallas_call).
        x = attn_block(x, blk["ln1_g"], blk["ln1_b"],
                       blk["attn_w"], blk["attn_b"],
                       blk["proj_w"], blk["proj_b"], H)
        # Fused: LN2 -> fc -> GELU(tanh) -> proj -> residual (1 pallas_call).
        x = mlp_block(x.reshape(B * T, C), blk["ln2_g"], blk["ln2_b"],
                      blk["fc_w"], blk["fc_b"],
                      blk["mproj_w"], blk["mproj_b"]).reshape(B, T, C)

    # Final LN + lm_head fused; vocab padded to a multiple of 128 for
    # lane-dense stores, pad columns sliced off afterwards (pad is constant-
    # folded under jit).
    V = cfg.vocab_size
    Vp = ((V + 127) // 128) * 128
    w_head = params["lm_head"]
    if Vp != V:
        w_head = jnp.pad(w_head, ((0, 0), (0, Vp - V)))
    logits_p = final_head(x.reshape(B * T, C), params["lnf_g"], params["lnf_b"], w_head)
    logits = logits_p[:, :V].reshape(B, T, V)

    loss = None
    if targets is not None:
        # Cross-entropy kept as plain-JAX glue (matches F.cross_entropy mean reduction).
        lsm = jax.nn.log_softmax(logits.reshape(-1, V), axis=-1)
        loss = -jnp.mean(jnp.take_along_axis(lsm, targets.reshape(-1, 1), axis=-1))
    return logits, loss


# ---------------------------------- main --------------------------------------

if __name__ == "__main__":
    cfg = GPTConfig(vocab_size=64, block_size=16, n_layer=2, n_head=2, n_embd=32)
    key = jax.random.PRNGKey(0)
    pkey, ikey, tkey = jax.random.split(key, 3)
    params = init_params(pkey, cfg)

    B, T = 2, 8
    idx = jax.random.randint(ikey, (B, T), 0, cfg.vocab_size, dtype=jnp.int32)
    targets = jax.random.randint(tkey, (B, T), 0, cfg.vocab_size, dtype=jnp.int32)

    # jit the full forward (embedding glue + all pallas_calls) so the per-layer
    # dispatch overhead disappears and the wrapper pads/reshapes are fused.
    fwd = jax.jit(lambda p, i, t: gpt_forward(p, i, cfg, targets=t))

    logits, loss = fwd(params, idx, targets)
    jax.block_until_ready(logits)
    jax.block_until_ready(loss)
    assert logits.shape == (B, T, cfg.vocab_size)
    assert logits.dtype == jnp.float32
    assert bool(jnp.isfinite(loss))
    print("KERNEL_OK")
</pallas_src>

<mosaic_0001>
module attributes {stable_mosaic.version = 11 : i64} {
  func.func @_attn_block_kernel(%arg0: i32, %arg1: memref<1x8x32xf32, #tpu.memory_space<vmem>>, %arg2: memref<1x32xf32, #tpu.memory_space<vmem>>, %arg3: memref<1x32xf32, #tpu.memory_space<vmem>>, %arg4: memref<32x96xf32, #tpu.memory_space<vmem>>, %arg5: memref<1x96xf32, #tpu.memory_space<vmem>>, %arg6: memref<32x32xf32, #tpu.memory_space<vmem>>, %arg7: memref<1x32xf32, #tpu.memory_space<vmem>>, %arg8: memref<1x8x32xf32, #tpu.memory_space<vmem>>) attributes {dimension_semantics = [#tpu.dimension_semantics<parallel>], iteration_bounds = array<i64: 2>, scalar_prefetch = 0 : i64, scratch_operands = 0 : i64, tpu.core_type = #tpu.core_type<tc>, window_params = [{transform_indices = @transform_0, window_bounds = array<i64: 1, 8, 32>}, {pipeline_mode = #tpu.pipeline_mode<synchronous>, transform_indices = @transform_1, window_bounds = array<i64: 1, 32>}, {pipeline_mode = #tpu.pipeline_mode<synchronous>, transform_indices = @transform_2, window_bounds = array<i64: 1, 32>}, {pipeline_mode = #tpu.pipeline_mode<synchronous>, transform_indices = @transform_3, window_bounds = array<i64: 32, 96>}, {pipeline_mode = #tpu.pipeline_mode<synchronous>, transform_indices = @transform_4, window_bounds = array<i64: 1, 96>}, {pipeline_mode = #tpu.pipeline_mode<synchronous>, transform_indices = @transform_5, window_bounds = array<i64: 32, 32>}, {pipeline_mode = #tpu.pipeline_mode<synchronous>, transform_indices = @transform_6, window_bounds = array<i64: 1, 32>}, {transform_indices = @transform_7, window_bounds = array<i64: 1, 8, 32>}]} {
    %c0 = arith.constant 0 : index
    %c0_0 = arith.constant 0 : index
    %c0_1 = arith.constant 0 : index
    %0 = vector.load %arg1[%c0, %c0_0, %c0_1] : memref<1x8x32xf32, #tpu.memory_space<vmem>>, vector<1x8x32xf32>
    %1 = vector.shape_cast %0 : vector<1x8x32xf32> to vector<8x32xf32>
    %c0_2 = arith.constant 0 : index
    %c0_3 = arith.constant 0 : index
    %2 = vector.load %arg2[%c0_2, %c0_3] : memref<1x32xf32, #tpu.memory_space<vmem>>, vector<1x32xf32>
    %c0_4 = arith.constant 0 : index
    %c0_5 = arith.constant 0 : index
    %3 = vector.load %arg3[%c0_4, %c0_5] : memref<1x32xf32, #tpu.memory_space<vmem>>, vector<1x32xf32>
    %cst = arith.constant dense<0.000000e+00> : vector<8xf32>
    %4 = vector.multi_reduction <add>, %1, %cst [1] : vector<8x32xf32> to vector<8xf32>
    %5 = vector.shape_cast %4 : vector<8xf32> to vector<8x1xf32>
    %cst_6 = arith.constant 3.200000e+01 : f32
    %6 = vector.broadcast %cst_6 : f32 to vector<8x1xf32>
    %7 = arith.divf %5, %6 : vector<8x1xf32>
    %8 = vector.broadcast %7 : vector<8x1xf32> to vector<8x32xf32>
    %9 = arith.subf %1, %8 : vector<8x32xf32>
    %10 = arith.mulf %9, %9 : vector<8x32xf32>
    %cst_7 = arith.constant dense<0.000000e+00> : vector<8xf32>
    %11 = vector.multi_reduction <add>, %10, %cst_7 [1] : vector<8x32xf32> to vector<8xf32>
    %12 = vector.shape_cast %11 : vector<8xf32> to vector<8x1xf32>
    %cst_8 = arith.constant 3.200000e+01 : f32
    %13 = vector.broadcast %cst_8 : f32 to vector<8x1xf32>
    %14 = arith.divf %12, %13 : vector<8x1xf32>
    %15 = vector.broadcast %7 : vector<8x1xf32> to vector<8x32xf32>
    %16 = arith.subf %1, %15 : vector<8x32xf32>
    %cst_9 = arith.constant 9.99999974E-6 : f32
    %17 = vector.broadcast %cst_9 : f32 to vector<8x1xf32>
    %18 = arith.addf %14, %17 : vector<8x1xf32>
    %19 = math.rsqrt %18 : vector<8x1xf32>
    %20 = vector.broadcast %19 : vector<8x1xf32> to vector<8x32xf32>
    %21 = arith.mulf %16, %20 : vector<8x32xf32>
    %22 = vector.broadcast %2 : vector<1x32xf32> to vector<8x32xf32>
    %23 = arith.mulf %21, %22 : vector<8x32xf32>
    %24 = vector.broadcast %3 : vector<1x32xf32> to vector<8x32xf32>
    %25 = arith.addf %23, %24 : vector<8x32xf32>
    %c0_10 = arith.constant 0 : index
    %c0_11 = arith.constant 0 : index
    %26 = vector.load %arg4[%c0_10, %c0_11] : memref<32x96xf32, #tpu.memory_space<vmem>>, vector<32x96xf32>
    %cst_12 = arith.constant dense<0.000000e+00> : vector<8x96xf32>
    %27 = tpu.matmul %25, %26, %cst_12 {dimension_numbers = #tpu.dot_dimension_numbers<[1], [0], [0], [1], [0, 0, 1, 1], [], []>} : vector<8x32xf32>, vector<32x96xf32>, vector<8x96xf32> -> vector<8x96xf32>
    %c0_13 = arith.constant 0 : index
    %c0_14 = arith.constant 0 : index
    %28 = vector.load %arg5[%c0_13, %c0_14] : memref<1x96xf32, #tpu.memory_space<vmem>>, vector<1x96xf32>
    %29 = vector.broadcast %28 : vector<1x96xf32> to vector<8x96xf32>
    %30 = arith.addf %27, %29 : vector<8x96xf32>
    %31 = vector.extract_strided_slice %30 {offsets = [0, 0], sizes = [8, 32], strides = [1, 1]} : vector<8x96xf32> to vector<8x32xf32>
    %32 = vector.extract_strided_slice %30 {offsets = [0, 32], sizes = [8, 32], strides = [1, 1]} : vector<8x96xf32> to vector<8x32xf32>
    %33 = vector.extract_strided_slice %30 {offsets = [0, 64], sizes = [8, 32], strides = [1, 1]} : vector<8x96xf32> to vector<8x32xf32>
    %34 = tpu.iota {dimensions = array<i32: 0>} : vector<8x8xi32>
    %35 = tpu.iota {dimensions = array<i32: 1>} : vector<8x8xi32>
    %36 = arith.cmpi sle, %35, %34 : vector<8x8xi32>
    %37 = vector.extract_strided_slice %31 {offsets = [0, 0], sizes = [8, 16], strides = [1, 1]} : vector<8x32xf32> to vector<8x16xf32>
    %38 = vector.extract_strided_slice %32 {offsets = [0, 0], sizes = [8, 16], strides = [1, 1]} : vector<8x32xf32> to vector<8x16xf32>
    %39 = vector.extract_strided_slice %33 {offsets = [0, 0], sizes = [8, 16], strides = [1, 1]} : vector<8x32xf32> to vector<8x16xf32>
    %40 = tpu.transpose %38, [1, 0] : vector<8x16xf32> -> vector<16x8xf32>
    %cst_15 = arith.constant dense<0.000000e+00> : vector<8x8xf32>
    %41 = tpu.matmul %37, %40, %cst_15 {dimension_numbers = #tpu.dot_dimension_numbers<[1], [0], [0], [1], [0, 0, 1, 1], [], []>} : vector<8x16xf32>, vector<16x8xf32>, vector<8x8xf32> -> vector<8x8xf32>
    %cst_16 = arith.constant 2.500000e-01 : f32
    %42 = vector.broadcast %cst_16 : f32 to vector<8x8xf32>
    %43 = arith.mulf %41, %42 : vector<8x8xf32>
    %cst_17 = arith.constant 0xFF800000 : f32
    %44 = vector.broadcast %cst_17 : f32 to vector<8x8xf32>
    %45 = arith.select %36, %43, %44 : vector<8x8xi1>, vector<8x8xf32>
    %cst_18 = arith.constant dense<0xFF800000> : vector<8xf32>
    %46 = vector.multi_reduction <maximumf>, %45, %cst_18 [1] : vector<8x8xf32> to vector<8xf32>
    %47 = vector.shape_cast %46 : vector<8xf32> to vector<8x1xf32>
    %48 = vector.broadcast %47 : vector<8x1xf32> to vector<8x8xf32>
    %49 = arith.subf %45, %48 : vector<8x8xf32>
    %50 = math.exp %49 : vector<8x8xf32>
    %cst_19 = arith.constant dense<0.000000e+00> : vector<8xf32>
    %51 = vector.multi_reduction <add>, %50, %cst_19 [1] : vector<8x8xf32> to vector<8xf32>
    %52 = vector.shape_cast %51 : vector<8xf32> to vector<8x1xf32>
    %53 = tpu.reciprocal %52 {approx = true} : vector<8x1xf32> -> vector<8x1xf32>
    %54 = vector.broadcast %53 : vector<8x1xf32> to vector<8x8xf32>
    %55 = arith.mulf %50, %54 : vector<8x8xf32>
    %cst_20 = arith.constant dense<0.000000e+00> : vector<8x16xf32>
    %56 = tpu.matmul %55, %39, %cst_20 {dimension_numbers = #tpu.dot_dimension_numbers<[1], [0], [0], [1], [0, 0, 1, 1], [], []>} : vector<8x8xf32>, vector<8x16xf32>, vector<8x16xf32> -> vector<8x16xf32>
    %57 = vector.extract_strided_slice %31 {offsets = [0, 16], sizes = [8, 16], strides = [1, 1]} : vector<8x32xf32> to vector<8x16xf32>
    %58 = vector.extract_strided_slice %32 {offsets = [0, 16], sizes = [8, 16], strides = [1, 1]} : vector<8x32xf32> to vector<8x16xf32>
    %59 = vector.extract_strided_slice %33 {offsets = [0, 16], sizes = [8, 16], strides = [1, 1]} : vector<8x32xf32> to vector<8x16xf32>
    %60 = tpu.transpose %58, [1, 0] : vector<8x16xf32> -> vector<16x8xf32>
    %cst_21 = arith.constant dense<0.000000e+00> : vector<8x8xf32>
    %61 = tpu.matmul %57, %60, %cst_21 {dimension_numbers = #tpu.dot_dimension_numbers<[1], [0], [0], [1], [0, 0, 1, 1], [], []>} : vector<8x16xf32>, vector<16x8xf32>, vector<8x8xf32> -> vector<8x8xf32>
    %cst_22 = arith.constant 2.500000e-01 : f32
    %62 = vector.broadcast %cst_22 : f32 to vector<8x8xf32>
    %63 = arith.mulf %61, %62 : vector<8x8xf32>
    %cst_23 = arith.constant 0xFF800000 : f32
    %64 = vector.broadcast %cst_23 : f32 to vector<8x8xf32>
    %65 = arith.select %36, %63, %64 : vector<8x8xi1>, vector<8x8xf32>
    %cst_24 = arith.constant dense<0xFF800000> : vector<8xf32>
    %66 = vector.multi_reduction <maximumf>, %65, %cst_24 [1] : vector<8x8xf32> to vector<8xf32>
    %67 = vector.shape_cast %66 : vector<8xf32> to vector<8x1xf32>
    %68 = vector.broadcast %67 : vector<8x1xf32> to vector<8x8xf32>
    %69 = arith.subf %65, %68 : vector<8x8xf32>
    %70 = math.exp %69 : vector<8x8xf32>
    %cst_25 = arith.constant dense<0.000000e+00> : vector<8xf32>
    %71 = vector.multi_reduction <add>, %70, %cst_25 [1] : vector<8x8xf32> to vector<8xf32>
    %72 = vector.shape_cast %71 : vector<8xf32> to vector<8x1xf32>
    %73 = tpu.reciprocal %72 {approx = true} : vector<8x1xf32> -> vector<8x1xf32>
    %74 = vector.broadcast %73 : vector<8x1xf32> to vector<8x8xf32>
    %75 = arith.mulf %70, %74 : vector<8x8xf32>
    %cst_26 = arith.constant dense<0.000000e+00> : vector<8x16xf32>
    %76 = tpu.matmul %75, %59, %cst_26 {dimension_numbers = #tpu.dot_dimension_numbers<[1], [0], [0], [1], [0, 0, 1, 1], [], []>} : vector<8x8xf32>, vector<8x16xf32>, vector<8x16xf32> -> vector<8x16xf32>
    %77 = tpu.concatenate %56, %76 in 1 : vector<8x16xf32>, vector<8x16xf32> -> vector<8x32xf32>
    %c0_27 = arith.constant 0 : index
    %c0_28 = arith.constant 0 : index
    %78 = vector.load %arg6[%c0_27, %c0_28] : memref<32x32xf32, #tpu.memory_space<vmem>>, vector<32x32xf32>
    %cst_29 = arith.constant dense<0.000000e+00> : vector<8x32xf32>
    %79 = tpu.matmul %77, %78, %cst_29 {dimension_numbers = #tpu.dot_dimension_numbers<[1], [0], [0], [1], [0, 0, 1, 1], [], []>} : vector<8x32xf32>, vector<32x32xf32>, vector<8x32xf32> -> vector<8x32xf32>
    %c0_30 = arith.constant 0 : index
    %c0_31 = arith.constant 0 : index
    %80 = vector.load %arg7[%c0_30, %c0_31] : memref<1x32xf32, #tpu.memory_space<vmem>>, vector<1x32xf32>
    %81 = vector.broadcast %80 : vector<1x32xf32> to vector<8x32xf32>
    %82 = arith.addf %79, %81 : vector<8x32xf32>
    %83 = arith.addf %1, %82 : vector<8x32xf32>
    %c0_32 = arith.constant 0 : index
    %c0_33 = arith.constant 0 : index
    %c0_34 = arith.constant 0 : index
    %84 = vector.load %arg8[%c0_32, %c0_33, %c0_34] : memref<1x8x32xf32, #tpu.memory_space<vmem>>, vector<1x8x32xf32>
    %85 = vector.shape_cast %84 : vector<1x8x32xf32> to vector<8x32xf32>
    %86 = vector.shape_cast %83 : vector<8x32xf32> to vector<1x8x32xf32>
    tpu.vector_store %arg8[%c0_32, %c0_33, %c0_34], %86 {strides = array<i32>} : memref<1x8x32xf32, #tpu.memory_space<vmem>>, vector<1x8x32xf32>,
    return
  }
  func.func @transform_0(%arg0: i32) -> (i32, i32, i32) {
    %c0_i32 = arith.constant 0 : i32
    %c0_i32_0 = arith.constant 0 : i32
    %c0_i32_1 = arith.constant 0 : i32
    return %arg0, %c0_i32, %c0_i32_0 : i32, i32, i32
  }
  func.func @transform_1(%arg0: i32) -> (i32, i32) {
    %c0_i32 = arith.constant 0 : i32
    %c0_i32_0 = arith.constant 0 : i32
    %c0_i32_1 = arith.constant 0 : i32
    return %c0_i32, %c0_i32_0 : i32, i32
  }
  func.func @transform_2(%arg0: i32) -> (i32, i32) {
    %c0_i32 = arith.constant 0 : i32
    %c0_i32_0 = arith.constant 0 : i32
    %c0_i32_1 = arith.constant 0 : i32
    return %c0_i32, %c0_i32_0 : i32, i32
  }
  func.func @transform_3(%arg0: i32) -> (i32, i32) {
    %c0_i32 = arith.constant 0 : i32
    %c0_i32_0 = arith.constant 0 : i32
    %c0_i32_1 = arith.constant 0 : i32
    return %c0_i32, %c0_i32_0 : i32, i32
  }
  func.func @transform_4(%arg0: i32) -> (i32, i32) {
    %c0_i32 = arith.constant 0 : i32
    %c0_i32_0 = arith.constant 0 : i32
    %c0_i32_1 = arith.constant 0 : i32
    return %c0_i32, %c0_i32_0 : i32, i32
  }
  func.func @transform_5(%arg0: i32) -> (i32, i32) {
    %c0_i32 = arith.constant 0 : i32
    %c0_i32_0 = arith.constant 0 : i32
    %c0_i32_1 = arith.constant 0 : i32
    return %c0_i32, %c0_i32_0 : i32, i32
  }
  func.func @transform_6(%arg0: i32) -> (i32, i32) {
    %c0_i32 = arith.constant 0 : i32
    %c0_i32_0 = arith.constant 0 : i32
    %c0_i32_1 = arith.constant 0 : i32
    return %c0_i32, %c0_i32_0 : i32, i32
  }
  func.func @transform_7(%arg0: i32) -> (i32, i32, i32) {
    %c0_i32 = arith.constant 0 : i32
    %c0_i32_0 = arith.constant 0 : i32
    %c0_i32_1 = arith.constant 0 : i32
    return %arg0, %c0_i32, %c0_i32_0 : i32, i32, i32
  }
}

module attributes {stable_mosaic.version = 11 : i64} {
  func.func @_mlp_block_kernel(%arg0: i32, %arg1: memref<16x32xf32, #tpu.memory_space<vmem>>, %arg2: memref<1x32xf32, #tpu.memory_space<vmem>>, %arg3: memref<1x32xf32, #tpu.memory_space<vmem>>, %arg4: memref<32x128xf32, #tpu.memory_space<vmem>>, %arg5: memref<1x128xf32, #tpu.memory_space<vmem>>, %arg6: memref<128x32xf32, #tpu.memory_space<vmem>>, %arg7: memref<1x32xf32, #tpu.memory_space<vmem>>, %arg8: memref<16x32xf32, #tpu.memory_space<vmem>>) attributes {dimension_semantics = [#tpu.dimension_semantics<parallel>], iteration_bounds = array<i64: 1>, scalar_prefetch = 0 : i64, scratch_operands = 0 : i64, tpu.core_type = #tpu.core_type<tc>, window_params = [{transform_indices = @transform_0, window_bounds = array<i64: 16, 32>}, {pipeline_mode = #tpu.pipeline_mode<synchronous>, transform_indices = @transform_1, window_bounds = array<i64: 1, 32>}, {pipeline_mode = #tpu.pipeline_mode<synchronous>, transform_indices = @transform_2, window_bounds = array<i64: 1, 32>}, {pipeline_mode = #tpu.pipeline_mode<synchronous>, transform_indices = @transform_3, window_bounds = array<i64: 32, 128>}, {pipeline_mode = #tpu.pipeline_mode<synchronous>, transform_indices = @transform_4, window_bounds = array<i64: 1, 128>}, {pipeline_mode = #tpu.pipeline_mode<synchronous>, transform_indices = @transform_5, window_bounds = array<i64: 128, 32>}, {pipeline_mode = #tpu.pipeline_mode<synchronous>, transform_indices = @transform_6, window_bounds = array<i64: 1, 32>}, {transform_indices = @transform_7, window_bounds = array<i64: 16, 32>}]} {
    %c0 = arith.constant 0 : index
    %c0_0 = arith.constant 0 : index
    %0 = vector.load %arg1[%c0, %c0_0] : memref<16x32xf32, #tpu.memory_space<vmem>>, vector<16x32xf32>
    %c0_1 = arith.constant 0 : index
    %c0_2 = arith.constant 0 : index
    %1 = vector.load %arg2[%c0_1, %c0_2] : memref<1x32xf32, #tpu.memory_space<vmem>>, vector<1x32xf32>
    %c0_3 = arith.constant 0 : index
    %c0_4 = arith.constant 0 : index
    %2 = vector.load %arg3[%c0_3, %c0_4] : memref<1x32xf32, #tpu.memory_space<vmem>>, vector<1x32xf32>
    %cst = arith.constant dense<0.000000e+00> : vector<16xf32>
    %3 = vector.multi_reduction <add>, %0, %cst [1] : vector<16x32xf32> to vector<16xf32>
    %4 = vector.shape_cast %3 : vector<16xf32> to vector<16x1xf32>
    %cst_5 = arith.constant 3.200000e+01 : f32
    %5 = vector.broadcast %cst_5 : f32 to vector<16x1xf32>
    %6 = arith.divf %4, %5 : vector<16x1xf32>
    %7 = vector.broadcast %6 : vector<16x1xf32> to vector<16x32xf32>
    %8 = arith.subf %0, %7 : vector<16x32xf32>
    %9 = arith.mulf %8, %8 : vector<16x32xf32>
    %cst_6 = arith.constant dense<0.000000e+00> : vector<16xf32>
    %10 = vector.multi_reduction <add>, %9, %cst_6 [1] : vector<16x32xf32> to vector<16xf32>
    %11 = vector.shape_cast %10 : vector<16xf32> to vector<16x1xf32>
    %cst_7 = arith.constant 3.200000e+01 : f32
    %12 = vector.broadcast %cst_7 : f32 to vector<16x1xf32>
    %13 = arith.divf %11, %12 : vector<16x1xf32>
    %14 = vector.broadcast %6 : vector<16x1xf32> to vector<16x32xf32>
    %15 = arith.subf %0, %14 : vector<16x32xf32>
    %cst_8 = arith.constant 9.99999974E-6 : f32
    %16 = vector.broadcast %cst_8 : f32 to vector<16x1xf32>
    %17 = arith.addf %13, %16 : vector<16x1xf32>
    %18 = math.rsqrt %17 : vector<16x1xf32>
    %19 = vector.broadcast %18 : vector<16x1xf32> to vector<16x32xf32>
    %20 = arith.mulf %15, %19 : vector<16x32xf32>
    %21 = vector.broadcast %1 : vector<1x32xf32> to vector<16x32xf32>
    %22 = arith.mulf %20, %21 : vector<16x32xf32>
    %23 = vector.broadcast %2 : vector<1x32xf32> to vector<16x32xf32>
    %24 = arith.addf %22, %23 : vector<16x32xf32>
    %c0_9 = arith.constant 0 : index
    %c0_10 = arith.constant 0 : index
    %25 = vector.load %arg4[%c0_9, %c0_10] : memref<32x128xf32, #tpu.memory_space<vmem>>, vector<32x128xf32>
    %cst_11 = arith.constant dense<0.000000e+00> : vector<16x128xf32>
    %26 = tpu.matmul %24, %25, %cst_11 {dimension_numbers = #tpu.dot_dimension_numbers<[1], [0], [0], [1], [0, 0, 1, 1], [], []>} : vector<16x32xf32>, vector<32x128xf32>, vector<16x128xf32> -> vector<16x128xf32>
    %c0_12 = arith.constant 0 : index
    %c0_13 = arith.constant 0 : index
    %27 = vector.load %arg5[%c0_12, %c0_13] : memref<1x128xf32, #tpu.memory_space<vmem>>, vector<1x128xf32>
    %28 = vector.broadcast %27 : vector<1x128xf32> to vector<16x128xf32>
    %29 = arith.addf %26, %28 : vector<16x128xf32>
    %cst_14 = arith.constant 5.000000e-01 : f32
    %30 = vector.broadcast %cst_14 : f32 to vector<16x128xf32>
    %31 = arith.mulf %30, %29 : vector<16x128xf32>
    %cst_15 = arith.constant 4.471500e-02 : f32
    %32 = vector.broadcast %cst_15 : f32 to vector<16x128xf32>
    %33 = arith.mulf %32, %29 : vector<16x128xf32>
    %34 = arith.mulf %33, %29 : vector<16x128xf32>
    %35 = arith.mulf %34, %29 : vector<16x128xf32>
    %36 = arith.addf %29, %35 : vector<16x128xf32>
    %cst_16 = arith.constant 0.797884583 : f32
    %37 = vector.broadcast %cst_16 : f32 to vector<16x128xf32>
    %38 = arith.mulf %37, %36 : vector<16x128xf32>
    %39 = math.tanh %38 : vector<16x128xf32>
    %cst_17 = arith.constant 1.000000e+00 : f32
    %40 = vector.broadcast %cst_17 : f32 to vector<16x128xf32>
    %41 = arith.addf %40, %39 : vector<16x128xf32>
    %42 = arith.mulf %31, %41 : vector<16x128xf32>
    %c0_18 = arith.constant 0 : index
    %c0_19 = arith.constant 0 : index
    %43 = vector.load %arg6[%c0_18, %c0_19] : memref<128x32xf32, #tpu.memory_space<vmem>>, vector<128x32xf32>
    %cst_20 = arith.constant dense<0.000000e+00> : vector<16x32xf32>
    %44 = tpu.matmul %42, %43, %cst_20 {dimension_numbers = #tpu.dot_dimension_numbers<[1], [0], [0], [1], [0, 0, 1, 1], [], []>} : vector<16x128xf32>, vector<128x32xf32>, vector<16x32xf32> -> vector<16x32xf32>
    %c0_21 = arith.constant 0 : index
    %c0_22 = arith.constant 0 : index
    %45 = vector.load %arg7[%c0_21, %c0_22] : memref<1x32xf32, #tpu.memory_space<vmem>>, vector<1x32xf32>
    %46 = vector.broadcast %45 : vector<1x32xf32> to vector<16x32xf32>
    %47 = arith.addf %44, %46 : vector<16x32xf32>
    %48 = arith.addf %0, %47 : vector<16x32xf32>
    %c0_23 = arith.constant 0 : index
    %c0_24 = arith.constant 0 : index
    %49 = vector.load %arg8[%c0_23, %c0_24] : memref<16x32xf32, #tpu.memory_space<vmem>>, vector<16x32xf32>
    tpu.vector_store %arg8[%c0_23, %c0_24], %48 {strides = array<i32>} : memref<16x32xf32, #tpu.memory_space<vmem>>, vector<16x32xf32>,
    return
  }
  func.func @transform_0(%arg0: i32) -> (i32, i32) {
    %c0_i32 = arith.constant 0 : i32
    %c0_i32_0 = arith.constant 0 : i32
    return %arg0, %c0_i32 : i32, i32
  }
  func.func @transform_1(%arg0: i32) -> (i32, i32) {
    %c0_i32 = arith.constant 0 : i32
    %c0_i32_0 = arith.constant 0 : i32
    %c0_i32_1 = arith.constant 0 : i32
    return %c0_i32, %c0_i32_0 : i32, i32
  }
  func.func @transform_2(%arg0: i32) -> (i32, i32) {
    %c0_i32 = arith.constant 0 : i32
    %c0_i32_0 = arith.constant 0 : i32
    %c0_i32_1 = arith.constant 0 : i32
    return %c0_i32, %c0_i32_0 : i32, i32
  }
  func.func @transform_3(%arg0: i32) -> (i32, i32) {
    %c0_i32 = arith.constant 0 : i32
    %c0_i32_0 = arith.constant 0 : i32
    %c0_i32_1 = arith.constant 0 : i32
    return %c0_i32, %c0_i32_0 : i32, i32
  }
  func.func @transform_4(%arg0: i32) -> (i32, i32) {
    %c0_i32 = arith.constant 0 : i32
    %c0_i32_0 = arith.constant 0 : i32
    %c0_i32_1 = arith.constant 0 : i32
    return %c0_i32, %c0_i32_0 : i32, i32
  }
  func.func @transform_5(%arg0: i32) -> (i32, i32) {
    %c0_i32 = arith.constant 0 : i32
    %c0_i32_0 = arith.constant 0 : i32
    %c0_i32_1 = arith.constant 0 : i32
    return %c0_i32, %c0_i32_0 : i32, i32
  }
  func.func @transform_6(%arg0: i32) -> (i32, i32) {
    %c0_i32 = arith.constant 0 : i32
    %c0_i32_0 = arith.constant 0 : i32
    %c0_i32_1 = arith.constant 0 : i32
    return %c0_i32, %c0_i32_0 : i32, i32
  }
  func.func @transform_7(%arg0: i32) -> (i32, i32) {
    %c0_i32 = arith.constant 0 : i32
    %c0_i32_0 = arith.constant 0 : i32
    return %arg0, %c0_i32 : i32, i32
  }
}

module attributes {stable_mosaic.version = 11 : i64} {
  func.func @_final_head_kernel(%arg0: i32, %arg1: memref<16x32xf32, #tpu.memory_space<vmem>>, %arg2: memref<1x32xf32, #tpu.memory_space<vmem>>, %arg3: memref<1x32xf32, #tpu.memory_space<vmem>>, %arg4: memref<32x128xf32, #tpu.memory_space<vmem>>, %arg5: memref<16x128xf32, #tpu.memory_space<vmem>>) attributes {dimension_semantics = [#tpu.dimension_semantics<parallel>], iteration_bounds = array<i64: 1>, scalar_prefetch = 0 : i64, scratch_operands = 0 : i64, tpu.core_type = #tpu.core_type<tc>, window_params = [{transform_indices = @transform_0, window_bounds = array<i64: 16, 32>}, {pipeline_mode = #tpu.pipeline_mode<synchronous>, transform_indices = @transform_1, window_bounds = array<i64: 1, 32>}, {pipeline_mode = #tpu.pipeline_mode<synchronous>, transform_indices = @transform_2, window_bounds = array<i64: 1, 32>}, {pipeline_mode = #tpu.pipeline_mode<synchronous>, transform_indices = @transform_3, window_bounds = array<i64: 32, 128>}, {transform_indices = @transform_4, window_bounds = array<i64: 16, 128>}]} {
    %c0 = arith.constant 0 : index
    %c0_0 = arith.constant 0 : index
    %0 = vector.load %arg1[%c0, %c0_0] : memref<16x32xf32, #tpu.memory_space<vmem>>, vector<16x32xf32>
    %c0_1 = arith.constant 0 : index
    %c0_2 = arith.constant 0 : index
    %1 = vector.load %arg2[%c0_1, %c0_2] : memref<1x32xf32, #tpu.memory_space<vmem>>, vector<1x32xf32>
    %c0_3 = arith.constant 0 : index
    %c0_4 = arith.constant 0 : index
    %2 = vector.load %arg3[%c0_3, %c0_4] : memref<1x32xf32, #tpu.memory_space<vmem>>, vector<1x32xf32>
    %cst = arith.constant dense<0.000000e+00> : vector<16xf32>
    %3 = vector.multi_reduction <add>, %0, %cst [1] : vector<16x32xf32> to vector<16xf32>
    %4 = vector.shape_cast %3 : vector<16xf32> to vector<16x1xf32>
    %cst_5 = arith.constant 3.200000e+01 : f32
    %5 = vector.broadcast %cst_5 : f32 to vector<16x1xf32>
    %6 = arith.divf %4, %5 : vector<16x1xf32>
    %7 = vector.broadcast %6 : vector<16x1xf32> to vector<16x32xf32>
    %8 = arith.subf %0, %7 : vector<16x32xf32>
    %9 = arith.mulf %8, %8 : vector<16x32xf32>
    %cst_6 = arith.constant dense<0.000000e+00> : vector<16xf32>
    %10 = vector.multi_reduction <add>, %9, %cst_6 [1] : vector<16x32xf32> to vector<16xf32>
    %11 = vector.shape_cast %10 : vector<16xf32> to vector<16x1xf32>
    %cst_7 = arith.constant 3.200000e+01 : f32
    %12 = vector.broadcast %cst_7 : f32 to vector<16x1xf32>
    %13 = arith.divf %11, %12 : vector<16x1xf32>
    %14 = vector.broadcast %6 : vector<16x1xf32> to vector<16x32xf32>
    %15 = arith.subf %0, %14 : vector<16x32xf32>
    %cst_8 = arith.constant 9.99999974E-6 : f32
    %16 = vector.broadcast %cst_8 : f32 to vector<16x1xf32>
    %17 = arith.addf %13, %16 : vector<16x1xf32>
    %18 = math.rsqrt %17 : vector<16x1xf32>
    %19 = vector.broadcast %18 : vector<16x1xf32> to vector<16x32xf32>
    %20 = arith.mulf %15, %19 : vector<16x32xf32>
    %21 = vector.broadcast %1 : vector<1x32xf32> to vector<16x32xf32>
    %22 = arith.mulf %20, %21 : vector<16x32xf32>
    %23 = vector.broadcast %2 : vector<1x32xf32> to vector<16x32xf32>
    %24 = arith.addf %22, %23 : vector<16x32xf32>
    %c0_9 = arith.constant 0 : index
    %c0_10 = arith.constant 0 : index
    %25 = vector.load %arg4[%c0_9, %c0_10] : memref<32x128xf32, #tpu.memory_space<vmem>>, vector<32x128xf32>
    %cst_11 = arith.constant dense<0.000000e+00> : vector<16x128xf32>
    %26 = tpu.matmul %24, %25, %cst_11 {dimension_numbers = #tpu.dot_dimension_numbers<[1], [0], [0], [1], [0, 0, 1, 1], [], []>} : vector<16x32xf32>, vector<32x128xf32>, vector<16x128xf32> -> vector<16x128xf32>
    %c0_12 = arith.constant 0 : index
    %c0_13 = arith.constant 0 : index
    %27 = vector.load %arg5[%c0_12, %c0_13] : memref<16x128xf32, #tpu.memory_space<vmem>>, vector<16x128xf32>
    tpu.vector_store %arg5[%c0_12, %c0_13], %26 {strides = array<i32>} : memref<16x128xf32, #tpu.memory_space<vmem>>, vector<16x128xf32>,
    return
  }
  func.func @transform_0(%arg0: i32) -> (i32, i32) {
    %c0_i32 = arith.constant 0 : i32
    %c0_i32_0 = arith.constant 0 : i32
    return %arg0, %c0_i32 : i32, i32
  }
  func.func @transform_1(%arg0: i32) -> (i32, i32) {
    %c0_i32 = arith.constant 0 : i32
    %c0_i32_0 = arith.constant 0 : i32
    %c0_i32_1 = arith.constant 0 : i32
    return %c0_i32, %c0_i32_0 : i32, i32
  }
  func.func @transform_2(%arg0: i32) -> (i32, i32) {
    %c0_i32 = arith.constant 0 : i32
    %c0_i32_0 = arith.constant 0 : i32
    %c0_i32_1 = arith.constant 0 : i32
    return %c0_i32, %c0_i32_0 : i32, i32
  }
  func.func @transform_3(%arg0: i32) -> (i32, i32) {
    %c0_i32 = arith.constant 0 : i32
    %c0_i32_0 = arith.constant 0 : i32
    %c0_i32_1 = arith.constant 0 : i32
    return %c0_i32, %c0_i32_0 : i32, i32
  }
  func.func @transform_4(%arg0: i32) -> (i32, i32) {
    %c0_i32 = arith.constant 0 : i32
    %c0_i32_0 = arith.constant 0 : i32
    return %arg0, %c0_i32 : i32, i32
  }
}

</mosaic_0001>

<llo_original>
// kernel: _lambda_.9
$region0: #{_lambda_.9}
  #allocation0 [shape = 'u32[]', space=smem, size = 0x4, offset = 0x4, fixed_abs, tag = 'smem constant byte address 0x4 - core index']
  #allocation1 [shape = 'u32[144,128]{1,0:T(1,128)}', space=vmem, size = 0x12000, scoped, tag = 'internal scratch']
  %s0 = inlined_call_operand.vmem [shape: f32[16,32], index: 0, kind: input, shape index: {}]
  %s1 = inlined_call_operand.vmem [shape: f32[1,32], index: 1, kind: input, shape index: {}]
  %s2 = inlined_call_operand.vmem [shape: f32[1,32], index: 2, kind: input, shape index: {}]
  %s3 = inlined_call_operand.vmem [shape: f32[32,128], index: 3, kind: input, shape index: {}]
  %s4 = inlined_call_operand.vmem [shape: f32[16,128], index: 4, kind: output, shape index: {}]
  %s5 = sld [smem:[#allocation0]]
  $region26: #{_lambda_.9} parent=0
    _
  %s7 = ssub.s32 1, %s5
  %s8 = scalar_select 0, %s7, %s5
  // Predicated region
  $region2: #{_lambda_.9} parent=0 // pred_check
    _
  $region3: #{_lambda_.9} parent=0 // pred_check_branch
    %10 = sbr.rel (0) target = $region5
  $region4: #{_lambda_.9} parent=0 // pred_region
    _
  $region5: #{_lambda_.9} parent=0 // pred_fallthru
    _
  // Predicated region
  $region6: #{_lambda_.9} parent=0 // pred_check
    _
  $region7: #{_lambda_.9} parent=0 // pred_check_branch
    %12 = sbr.rel (0) target = $region9
  $region8: #{_lambda_.9} parent=0 // pred_region
    _
  $region9: #{_lambda_.9} parent=0 // pred_fallthru
    _
  // Predicated region
  $region10: #{_lambda_.9} parent=0 // pred_check
    _
  $region11: #{_lambda_.9} parent=0 // pred_check_branch
    %14 = sbr.rel (0) target = $region13
  $region12: #{_lambda_.9} parent=0 // pred_region
    _
  $region13: #{_lambda_.9} parent=0 // pred_fallthru
    _
  // Predicated region
  $region14: #{_lambda_.9} parent=0 // pred_check
    _
  $region15: #{_lambda_.9} parent=0 // pred_check_branch
    %16 = sbr.rel (0) target = $region17
  $region16: #{_lambda_.9} parent=0 // pred_region
    _
  $region17: #{_lambda_.9} parent=0 // pred_fallthru
    _
  %v17 = vld [vmem:[%s0] sm:$0xff]
  %v18 = vld [vmem:[%s0 + $0x8] sm:$0xff]
  %v19 = vld [vmem:[%s1] sm:$0x1]
  %v20 = vld [vmem:[%s2] sm:$0x1]
  %vm21 = vcmask 261120
  %v22 = vsel %vm21, %v17, 0.0
  %23 = vadd.xlane.f32.xlu0 %v22
  %v24 = vpop.xlane.xlu0 %23
  %v25 = vsel %vm21, %v18, 0.0
  %26 = vadd.xlane.f32.xlu0 %v25
  %v27 = vpop.xlane.xlu0 %26
  %v28 = vrcp.pop 32.0
  %v29 = vmul.f32 %v24, %v28
  %v30 = vmul.f32 %v27, %v28
  %v31 = vsub.f32 %v17, %v29
  %v32 = vsub.f32 %v18, %v30
  %v33 = vmul.f32 %v31, %v31
  %v34 = vmul.f32 %v32, %v32
  %v35 = vsel %vm21, %v33, 0.0
  %36 = vadd.xlane.f32.xlu0 %v35
  %v37 = vpop.xlane.xlu0 %36
  %v38 = vsel %vm21, %v34, 0.0
  %39 = vadd.xlane.f32.xlu0 %v38
  %v40 = vpop.xlane.xlu0 %39
  %v41 = vmul.f32 %v37, %v28
  %v42 = vmul.f32 %v40, %v28
  %v43 = vadd.f32 %v41, 1e-05
  %v44 = vadd.f32 %v42, 1e-05
  %v45 = vrsqrt.pop %v43
  %v46 = vrsqrt.pop %v44
  %v47 = vmul.f32 %v31, %v45
  %v48 = vmul.f32 %v32, %v46
  %v50 = vlaneseq
  %v51 = vshrl.u32 %v50, 7
  %v52 = vsub.s32 0, %v51
  %v53 = vrot.slane %v19, %v52
  %v55 = vmul.f32 %v47, %v53
  %v56 = vmul.f32 %v48, %v53
  %v58 = vlaneseq
  %v59 = vshrl.u32 %v58, 7
  %v60 = vsub.s32 0, %v59
  %v61 = vrot.slane %v20, %v60
  %v63 = vadd.f32 %v55, %v61
  %v64 = vadd.f32 %v56, %v61
  %v65 = vld [vmem:[%s3] sm:$0xff]
  %v66 = vld [vmem:[%s3 + $0x8] sm:$0xff]
  %v67 = vld [vmem:[%s3 + $0x10] sm:$0xff]
  %v68 = vld [vmem:[%s3 + $0x18] sm:$0xff]
  %v70 = vsel %vm21, %v63, 0
  %v73 = vsel %vm21, %v64, 0
  %75 = vmatprep.subr.mxu0 0.0
  %76 = vmatpush1.msra.mxu0 %v65
  %77 = vmatprep.subr.mxu0 0.0
  %78 = vmatpush1.msra.mxu0 %v66
  %79 = vmatprep.subr.mxu0 0.0
  %80 = vmatpush1.msra.mxu0 %v67
  %81 = vmatprep.subr.mxu0 0.0
  %82 = vmatpush1.msra.mxu0 %v68
  %83 = vmatprep.subr.mxu0 0.0
  %84 = vmatpush1.msra.mxu0 0.0
  %85 = vmatprep.subr.mxu0 0.0
  %86 = vmatpush1.msra.mxu0 0.0
  %87 = vmatprep.subr.mxu0 0.0
  %88 = vmatpush1.msra.mxu0 0.0
  %89 = vmatprep.subr.mxu0 0.0
  %90 = vmatpush1.msra.mxu0 0.0
  %91 = vmatprep.subr.mxu0 0.0
  %92 = vmatpush1.msra.mxu0 0.0
  %93 = vmatprep.subr.mxu0 0.0
  %94 = vmatpush1.msra.mxu0 0.0
  %95 = vmatprep.subr.mxu0 0.0
  %96 = vmatpush1.msra.mxu0 0.0
  %97 = vmatprep.subr.mxu0 0.0
  %98 = vmatpush1.msra.mxu0 0.0
  %99 = vmatprep.subr.mxu0 0.0
  %100 = vmatpush1.msra.mxu0 0.0
  %101 = vmatprep.subr.mxu0 0.0
  %102 = vmatpush1.msra.mxu0 0.0
  %103 = vmatprep.subr.mxu0 0.0
  %104 = vmatpush1.msra.mxu0 0.0
  %105 = vmatprep.subr.mxu0 0.0
  %106 = vmatpush1.msra.mxu0 0.0
  %107 = vmatprep.subr.mxu0 0.0
  %108 = vmatpush1.msra.mxu0 0.0
  %109 = vmatprep.subr.mxu0 0.0
  %110 = vmatpush1.msra.mxu0 0.0
  %111 = vmatprep.subr.mxu0 0.0
  %112 = vmatpush1.msra.mxu0 0.0
  %113 = vmatprep.subr.mxu0 0.0
  %114 = vmatpush1.msra.mxu0 0.0
  %115 = vmatprep.subr.mxu0 0.0
  %116 = vmatpush1.msra.mxu0 0.0
  %117 = vmatprep.subr.mxu0 0.0
  %118 = vmatpush1.msra.mxu0 0.0
  %119 = vmatprep.subr.mxu0 0.0
  %120 = vmatpush1.msra.mxu0 0.0
  %121 = vmatprep.subr.mxu0 0.0
  %122 = vmatpush1.msra.mxu0 0.0
  %123 = vmatprep.subr.mxu0 0.0
  %124 = vmatpush1.msra.mxu0 0.0
  %125 = vmatprep.subr.mxu0 0.0
  %126 = vmatpush1.msra.mxu0 0.0
  %127 = vmatprep.subr.mxu0 0.0
  %128 = vmatpush1.msra.mxu0 0.0
  %129 = vmatprep.subr.mxu0 0.0
  %130 = vmatpush1.msra.mxu0 0.0
  %131 = vmatprep.subr.mxu0 0.0
  %132 = vmatpush1.msra.mxu0 0.0
  %133 = vmatprep.subr.mxu0 0.0
  %134 = vmatpush1.msra.mxu0 0.0
  %135 = vmatprep.subr.mxu0 0.0
  %136 = vmatpush1.msra.mxu0 0.0
  %137 = vmatprep.subr.mxu0 0.0
  %138 = vmatpush1.msra.mxu0 0.0
  %139 = vmatprep.mubr.f32.mxu0 0.0
  %140 = vmatmul.mubr.f32.gmra.mrb[0].mxu0 %v70
  %v141 = vpop.f32.mrb[0].mxu0
  %v142 = vadd.f32 0.0, %v141
  %v143 = vpop.f32.mrb[0].mxu0
  %144 = vmatprep.mubr.f32.mxu0 0.0
  %145 = vmatmul.mubr.f32.gmra.mrb[0].mxu0 %v73
  %v146 = vpop.f32.mrb[0].mxu0
  %v147 = vadd.f32 0.0, %v146
  %v148 = vpop.f32.mrb[0].mxu0
  %149 = vdwg.mxu0
  %150 = vst [vmem:[%s4] sm:$0xff] %v142
  %151 = vst [vmem:[%s4 + $0x8] sm:$0xff] %v147
  // Predicated region
  $region18: #{_lambda_.9} parent=0 // pred_check
    _
  $region19: #{_lambda_.9} parent=0 // pred_check_branch
    %153 = sbr.rel (0) target = $region21
  $region20: #{_lambda_.9} parent=0 // pred_region
    _
  $region21: #{_lambda_.9} parent=0 // pred_fallthru
    _
  // Predicated region
  $region22: #{_lambda_.9} parent=0 // pred_check
    _
  $region23: #{_lambda_.9} parent=0 // pred_check_branch
    %155 = sbr.rel (0) target = $region25
  $region24: #{_lambda_.9} parent=0 // pred_region
    _
  $region25: #{_lambda_.9} parent=0 // pred_fallthru
    _

// kernel: _lambda_.6
$region0: #{_lambda_.6}
  #allocation0 [shape = 'u32[]', space=smem, size = 0x4, offset = 0x4, fixed_abs, tag = 'smem constant byte address 0x4 - core index']
  #allocation1 [shape = 'u32[144,128]{1,0:T(1,128)}', space=vmem, size = 0x12000, scoped, tag = 'internal scratch']
  %s0 = inlined_call_operand.vmem [shape: f32[16,32], index: 0, kind: input, shape index: {}]
  %s1 = inlined_call_operand.vmem [shape: f32[1,32], index: 1, kind: input, shape index: {}]
  %s2 = inlined_call_operand.vmem [shape: f32[1,32], index: 2, kind: input, shape index: {}]
  %s3 = inlined_call_operand.vmem [shape: f32[32,128], index: 3, kind: input, shape index: {}]
  %s4 = inlined_call_operand.vmem [shape: f32[1,128], index: 4, kind: input, shape index: {}]
  %s5 = inlined_call_operand.vmem [shape: f32[128,32], index: 5, kind: input, shape index: {}]
  %s6 = inlined_call_operand.vmem [shape: f32[1,32], index: 6, kind: input, shape index: {}]
  %s7 = inlined_call_operand.vmem [shape: f32[16,32], index: 7, kind: output, shape index: {}]
  %s8 = sld [smem:[#allocation0]]
  $region38: #{_lambda_.6} parent=0
    _
  %s10 = ssub.s32 1, %s8
  %s11 = scalar_select 0, %s10, %s8
  // Predicated region
  $region2: #{_lambda_.6} parent=0 // pred_check
    _
  $region3: #{_lambda_.6} parent=0 // pred_check_branch
    %13 = sbr.rel (0) target = $region5
  $region4: #{_lambda_.6} parent=0 // pred_region
    _
  $region5: #{_lambda_.6} parent=0 // pred_fallthru
    _
  // Predicated region
  $region6: #{_lambda_.6} parent=0 // pred_check
    _
  $region7: #{_lambda_.6} parent=0 // pred_check_branch
    %15 = sbr.rel (0) target = $region9
  $region8: #{_lambda_.6} parent=0 // pred_region
    _
  $region9: #{_lambda_.6} parent=0 // pred_fallthru
    _
  // Predicated region
  $region10: #{_lambda_.6} parent=0 // pred_check
    _
  $region11: #{_lambda_.6} parent=0 // pred_check_branch
    %17 = sbr.rel (0) target = $region13
  $region12: #{_lambda_.6} parent=0 // pred_region
    _
  $region13: #{_lambda_.6} parent=0 // pred_fallthru
    _
  // Predicated region
  $region14: #{_lambda_.6} parent=0 // pred_check
    _
  $region15: #{_lambda_.6} parent=0 // pred_check_branch
    %19 = sbr.rel (0) target = $region17
  $region16: #{_lambda_.6} parent=0 // pred_region
    _
  $region17: #{_lambda_.6} parent=0 // pred_fallthru
    _
  // Predicated region
  $region18: #{_lambda_.6} parent=0 // pred_check
    _
  $region19: #{_lambda_.6} parent=0 // pred_check_branch
    %21 = sbr.rel (0) target = $region21
  $region20: #{_lambda_.6} parent=0 // pred_region
    _
  $region21: #{_lambda_.6} parent=0 // pred_fallthru
    _
  // Predicated region
  $region22: #{_lambda_.6} parent=0 // pred_check
    _
  $region23: #{_lambda_.6} parent=0 // pred_check_branch
    %23 = sbr.rel (0) target = $region25
  $region24: #{_lambda_.6} parent=0 // pred_region
    _
  $region25: #{_lambda_.6} parent=0 // pred_fallthru
    _
  // Predicated region
  $region26: #{_lambda_.6} parent=0 // pred_check
    _
  $region27: #{_lambda_.6} parent=0 // pred_check_branch
    %25 = sbr.rel (0) target = $region29
  $region28: #{_lambda_.6} parent=0 // pred_region
    _
  $region29: #{_lambda_.6} parent=0 // pred_fallthru
    _
  %v26 = vld [vmem:[%s0] sm:$0xff]
  %v27 = vld [vmem:[%s0 + $0x8] sm:$0xff]
  %v28 = vld [vmem:[%s1] sm:$0x1]
  %v29 = vld [vmem:[%s2] sm:$0x1]
  %vm30 = vcmask 261120
  %v31 = vsel %vm30, %v26, 0.0
  %32 = vadd.xlane.f32.xlu0 %v31
  %v33 = vpop.xlane.xlu0 %32
  %v34 = vsel %vm30, %v27, 0.0
  %35 = vadd.xlane.f32.xlu0 %v34
  %v36 = vpop.xlane.xlu0 %35
  %v37 = vrcp.pop 32.0
  %v38 = vmul.f32 %v33, %v37
  %v39 = vmul.f32 %v36, %v37
  %v40 = vsub.f32 %v26, %v38
  %v41 = vsub.f32 %v27, %v39
  %v42 = vmul.f32 %v40, %v40
  %v43 = vmul.f32 %v41, %v41
  %v44 = vsel %vm30, %v42, 0.0
  %45 = vadd.xlane.f32.xlu0 %v44
  %v46 = vpop.xlane.xlu0 %45
  %v47 = vsel %vm30, %v43, 0.0
  %48 = vadd.xlane.f32.xlu0 %v47
  %v49 = vpop.xlane.xlu0 %48
  %v50 = vmul.f32 %v46, %v37
  %v51 = vmul.f32 %v49, %v37
  %v52 = vadd.f32 %v50, 1e-05
  %v53 = vadd.f32 %v51, 1e-05
  %v54 = vrsqrt.pop %v52
  %v55 = vrsqrt.pop %v53
  %v56 = vmul.f32 %v40, %v54
  %v57 = vmul.f32 %v41, %v55
  %v59 = vlaneseq
  %v60 = vshrl.u32 %v59, 7
  %v61 = vsub.s32 0, %v60
  %v62 = vrot.slane %v28, %v61
  %v64 = vmul.f32 %v56, %v62
  %v65 = vmul.f32 %v57, %v62
  %v67 = vlaneseq
  %v68 = vshrl.u32 %v67, 7
  %v69 = vsub.s32 0, %v68
  %v70 = vrot.slane %v29, %v69
  %v72 = vadd.f32 %v64, %v70
  %v73 = vadd.f32 %v65, %v70
  %v74 = vld [vmem:[%s3] sm:$0xff]
  %v75 = vld [vmem:[%s3 + $0x8] sm:$0xff]
  %v76 = vld [vmem:[%s3 + $0x10] sm:$0xff]
  %v77 = vld [vmem:[%s3 + $0x18] sm:$0xff]
  %v78 = vld [vmem:[%s4] sm:$0x1]
  %v80 = vlaneseq
  %v81 = vshrl.u32 %v80, 7
  %v82 = vsub.s32 0, %v81
  %v83 = vrot.slane %v78, %v82
  %v86 = vsel %vm30, %v72, 0
  %v89 = vsel %vm30, %v73, 0
  %91 = vmatprep.subr.mxu0 0.0
  %92 = vmatpush1.msra.mxu0 %v74
  %93 = vmatprep.subr.mxu0 0.0
  %94 = vmatpush1.msra.mxu0 %v75
  %95 = vmatprep.subr.mxu0 0.0
  %96 = vmatpush1.msra.mxu0 %v76
  %97 = vmatprep.subr.mxu0 0.0
  %98 = vmatpush1.msra.mxu0 %v77
  %99 = vmatprep.subr.mxu0 0.0
  %100 = vmatpush1.msra.mxu0 0.0
  %101 = vmatprep.subr.mxu0 0.0
  %102 = vmatpush1.msra.mxu0 0.0
  %103 = vmatprep.subr.mxu0 0.0
  %104 = vmatpush1.msra.mxu0 0.0
  %105 = vmatprep.subr.mxu0 0.0
  %106 = vmatpush1.msra.mxu0 0.0
  %107 = vmatprep.subr.mxu0 0.0
  %108 = vmatpush1.msra.mxu0 0.0
  %109 = vmatprep.subr.mxu0 0.0
  %110 = vmatpush1.msra.mxu0 0.0
  %111 = vmatprep.subr.mxu0 0.0
  %112 = vmatpush1.msra.mxu0 0.0
  %113 = vmatprep.subr.mxu0 0.0
  %114 = vmatpush1.msra.mxu0 0.0
  %115 = vmatprep.subr.mxu0 0.0
  %116 = vmatpush1.msra.mxu0 0.0
  %117 = vmatprep.subr.mxu0 0.0
  %118 = vmatpush1.msra.mxu0 0.0
  %119 = vmatprep.subr.mxu0 0.0
  %120 = vmatpush1.msra.mxu0 0.0
  %121 = vmatprep.subr.mxu0 0.0
  %122 = vmatpush1.msra.mxu0 0.0
  %123 = vmatprep.subr.mxu0 0.0
  %124 = vmatpush1.msra.mxu0 0.0
  %125 = vmatprep.subr.mxu0 0.0
  %126 = vmatpush1.msra.mxu0 0.0
  %127 = vmatprep.subr.mxu0 0.0
  %128 = vmatpush1.msra.mxu0 0.0
  %129 = vmatprep.subr.mxu0 0.0
  %130 = vmatpush1.msra.mxu0 0.0
  %131 = vmatprep.subr.mxu0 0.0
  %132 = vmatpush1.msra.mxu0 0.0
  %133 = vmatprep.subr.mxu0 0.0
  %134 = vmatpush1.msra.mxu0 0.0
  %135 = vmatprep.subr.mxu0 0.0
  %136 = vmatpush1.msra.mxu0 0.0
  %137 = vmatprep.subr.mxu0 0.0
  %138 = vmatpush1.msra.mxu0 0.0
  %139 = vmatprep.subr.mxu0 0.0
  %140 = vmatpush1.msra.mxu0 0.0
  %141 = vmatprep.subr.mxu0 0.0
  %142 = vmatpush1.msra.mxu0 0.0
  %143 = vmatprep.subr.mxu0 0.0
  %144 = vmatpush1.msra.mxu0 0.0
  %145 = vmatprep.subr.mxu0 0.0
  %146 = vmatpush1.msra.mxu0 0.0
  %147 = vmatprep.subr.mxu0 0.0
  %148 = vmatpush1.msra.mxu0 0.0
  %149 = vmatprep.subr.mxu0 0.0
  %150 = vmatpush1.msra.mxu0 0.0
  %151 = vmatprep.subr.mxu0 0.0
  %152 = vmatpush1.msra.mxu0 0.0
  %153 = vmatprep.subr.mxu0 0.0
  %154 = vmatpush1.msra.mxu0 0.0
  %155 = vmatprep.mubr.f32.mxu0 0.0
  %156 = vmatmul.mubr.f32.gmra.mrb[0].mxu0 %v86
  %v157 = vpop.f32.mrb[0].mxu0
  %v158 = vadd.f32 %v83, %v157
  %v159 = vpop.f32.mrb[0].mxu0
  %160 = vmatprep.mubr.f32.mxu0 0.0
  %161 = vmatmul.mubr.f32.gmra.mrb[0].mxu0 %v89
  %v162 = vpop.f32.mrb[0].mxu0
  %v163 = vadd.f32 %v83, %v162
  %v164 = vpop.f32.mrb[0].mxu0
  %165 = vdwg.mxu0
  %v166 = vmul.f32 %v158, 0.5
  %v167 = vmul.f32 %v163, 0.5
  %v168 = vmul.f32 %v158, 0.044715
  %v169 = vmul.f32 %v163, 0.044715
  %v170 = vmul.f32 %v168, %v158
  %v171 = vmul.f32 %v169, %v163
  %v172 = vmul.f32 %v170, %v158
  %v173 = vmul.f32 %v171, %v163
  %v174 = vadd.f32 %v158, %v172
  %v175 = vadd.f32 %v163, %v173
  %v176 = vmul.f32 %v174, 0.7978846
  %v177 = vmul.f32 %v175, 0.7978846
  %v178 = vtanh.pop %v176
  %v179 = vtanh.pop %v177
  %v180 = vadd.f32 %v178, 1.0
  %v181 = vadd.f32 %v179, 1.0
  %v182 = vmul.f32 %v166, %v180
  %v183 = vmul.f32 %v167, %v181
  %v184 = vld [vmem:[%s5] sm:$0xff]
  %v185 = vld [vmem:[%s5 + $0x8] sm:$0xff]
  %v186 = vld [vmem:[%s5 + $0x10] sm:$0xff]
  %v187 = vld [vmem:[%s5 + $0x18] sm:$0xff]
  %v188 = vld [vmem:[%s5 + $0x20] sm:$0xff]
  %v189 = vld [vmem:[%s5 + $0x28] sm:$0xff]
  %v190 = vld [vmem:[%s5 + $0x30] sm:$0xff]
  %v191 = vld [vmem:[%s5 + $0x38] sm:$0xff]
  %v192 = vld [vmem:[%s5 + $0x40] sm:$0xff]
  %v193 = vld [vmem:[%s5 + $0x48] sm:$0xff]
  %v194 = vld [vmem:[%s5 + $0x50] sm:$0xff]
  %v195 = vld [vmem:[%s5 + $0x58] sm:$0xff]
  %v196 = vld [vmem:[%s5 + $0x60] sm:$0xff]
  %v197 = vld [vmem:[%s5 + $0x68] sm:$0xff]
  %v198 = vld [vmem:[%s5 + $0x70] sm:$0xff]
  %v199 = vld [vmem:[%s5 + $0x78] sm:$0xff]
  %v200 = vld [vmem:[%s6] sm:$0x1]
  %v202 = vlaneseq
  %v203 = vshrl.u32 %v202, 7
  %v204 = vsub.s32 0, %v203
  %v205 = vrot.slane %v200, %v204
  %207 = vmatprep.subr.mxu0 0.0
  %208 = vmatpush1.msra.mxu0 %v184
  %209 = vmatprep.subr.mxu0 0.0
  %210 = vmatpush1.msra.mxu0 %v185
  %211 = vmatprep.subr.mxu0 0.0
  %212 = vmatpush1.msra.mxu0 %v186
  %213 = vmatprep.subr.mxu0 0.0
  %214 = vmatpush1.msra.mxu0 %v187
  %215 = vmatprep.subr.mxu0 0.0
  %216 = vmatpush1.msra.mxu0 %v188
  %217 = vmatprep.subr.mxu0 0.0
  %218 = vmatpush1.msra.mxu0 %v189
  %219 = vmatprep.subr.mxu0 0.0
  %220 = vmatpush1.msra.mxu0 %v190
  %221 = vmatprep.subr.mxu0 0.0
  %222 = vmatpush1.msra.mxu0 %v191
  %223 = vmatprep.subr.mxu0 0.0
  %224 = vmatpush1.msra.mxu0 %v192
  %225 = vmatprep.subr.mxu0 0.0
  %226 = vmatpush1.msra.mxu0 %v193
  %227 = vmatprep.subr.mxu0 0.0
  %228 = vmatpush1.msra.mxu0 %v194
  %229 = vmatprep.subr.mxu0 0.0
  %230 = vmatpush1.msra.mxu0 %v195
  %231 = vmatprep.subr.mxu0 0.0
  %232 = vmatpush1.msra.mxu0 %v196
  %233 = vmatprep.subr.mxu0 0.0
  %234 = vmatpush1.msra.mxu0 %v197
  %235 = vmatprep.subr.mxu0 0.0
  %236 = vmatpush1.msra.mxu0 %v198
  %237 = vmatprep.subr.mxu0 0.0
  %238 = vmatpush1.msra.mxu0 %v199
  %239 = vmatprep.subr.mxu0 0.0
  %240 = vmatpush1.msra.mxu0 0.0
  %241 = vmatprep.subr.mxu0 0.0
  %242 = vmatpush1.msra.mxu0 0.0
  %243 = vmatprep.subr.mxu0 0.0
  %244 = vmatpush1.msra.mxu0 0.0
  %245 = vmatprep.subr.mxu0 0.0
  %246 = vmatpush1.msra.mxu0 0.0
  %247 = vmatprep.subr.mxu0 0.0
  %248 = vmatpush1.msra.mxu0 0.0
  %249 = vmatprep.subr.mxu0 0.0
  %250 = vmatpush1.msra.mxu0 0.0
  %251 = vmatprep.subr.mxu0 0.0
  %252 = vmatpush1.msra.mxu0 0.0
  %253 = vmatprep.subr.mxu0 0.0
  %254 = vmatpush1.msra.mxu0 0.0
  %255 = vmatprep.subr.mxu0 0.0
  %256 = vmatpush1.msra.mxu0 0.0
  %257 = vmatprep.subr.mxu0 0.0
  %258 = vmatpush1.msra.mxu0 0.0
  %259 = vmatprep.subr.mxu0 0.0
  %260 = vmatpush1.msra.mxu0 0.0
  %261 = vmatprep.subr.mxu0 0.0
  %262 = vmatpush1.msra.mxu0 0.0
  %263 = vmatprep.subr.mxu0 0.0
  %264 = vmatpush1.msra.mxu0 0.0
  %265 = vmatprep.subr.mxu0 0.0
  %266 = vmatpush1.msra.mxu0 0.0
  %267 = vmatprep.subr.mxu0 0.0
  %268 = vmatpush1.msra.mxu0 0.0
  %269 = vmatprep.subr.mxu0 0.0
  %270 = vmatpush1.msra.mxu0 0.0
  %271 = vmatprep.mubr.f32.mxu0 0.0
  %272 = vmatmul.mubr.f32.gmra.mrb[0].mxu0 %v182
  %v273 = vpop.f32.mrb[0].mxu0
  %v274 = vadd.f32 %v205, %v273
  %v275 = vpop.f32.mrb[0].mxu0
  %276 = vmatprep.mubr.f32.mxu0 0.0
  %277 = vmatmul.mubr.f32.gmra.mrb[0].mxu0 %v183
  %v278 = vpop.f32.mrb[0].mxu0
  %v279 = vadd.f32 %v205, %v278
  %v280 = vpop.f32.mrb[0].mxu0
  %281 = vdwg.mxu0
  %v282 = vadd.f32 %v26, %v274
  %v283 = vadd.f32 %v27, %v279
  %284 = vst.msk [vmem:[%s7] sm:$0xff] %vm30, %v282
  %285 = vst.msk [vmem:[%s7 + $0x8] sm:$0xff] %vm30, %v283
  // Predicated region
  $region30: #{_lambda_.6} parent=0 // pred_check
    _
  $region31: #{_lambda_.6} parent=0 // pred_check_branch
    %287 = sbr.rel (0) target = $region33
  $region32: #{_lambda_.6} parent=0 // pred_region
    _
  $region33: #{_lambda_.6} parent=0 // pred_fallthru
    _
  // Predicated region
  $region34: #{_lambda_.6} parent=0 // pred_check
    _
  $region35: #{_lambda_.6} parent=0 // pred_check_branch
    %289 = sbr.rel (0) target = $region37
  $region36: #{_lambda_.6} parent=0 // pred_region
    _
  $region37: #{_lambda_.6} parent=0 // pred_fallthru
    _

// kernel: _lambda_.5
$region0: #{_lambda_.5}
  #allocation0 [shape = 'u32[]', space=smem, size = 0x4, offset = 0x4, fixed_abs, tag = 'smem constant byte address 0x4 - core index']
  #allocation1 [shape = 'u32[144,128]{1,0:T(1,128)}', space=vmem, size = 0x12000, scoped, tag = 'internal scratch']
  %s0 = inlined_call_operand.vmem [shape: f32[2,8,32], index: 0, kind: input, shape index: {}]
  %s1 = inlined_call_operand.vmem [shape: f32[1,32], index: 1, kind: input, shape index: {}]
  %s2 = inlined_call_operand.vmem [shape: f32[1,32], index: 2, kind: input, shape index: {}]
  %s3 = inlined_call_operand.vmem [shape: f32[32,96], index: 3, kind: input, shape index: {}]
  %s4 = inlined_call_operand.vmem [shape: f32[1,96], index: 4, kind: input, shape index: {}]
  %s5 = inlined_call_operand.vmem [shape: f32[32,32], index: 5, kind: input, shape index: {}]
  %s6 = inlined_call_operand.vmem [shape: f32[1,32], index: 6, kind: input, shape index: {}]
  %s7 = inlined_call_operand.vmem [shape: f32[2,8,32], index: 7, kind: output, shape index: {}]
  %s8 = sld [smem:[#allocation0]]
  $region61: #{_lambda_.5} parent=0
    _
  %s10 = ssub.s32 1, %s8
  %s11 = scalar_select 0, %s10, %s8
  loop: start=0, step=1, limit=4
  $region2: #{_lambda_.5} parent=0 // loop_pre_header
    _
  $region3: #{_lambda_.5} parent=0 // loop_header
    %s13 = sphi 0, %s17
    %p14 = scmp.ge.s32.totalorder %s13, 4
    %s23 = sphi 0, %s25
    %s26 = sphi 0, %s23
    %s27 = sphi 0, %s26
    %s43 = sphi 0, %s27
    %s47 = sphi 0, %s47
    %s49 = sphi 0, %s47
    %s50 = sphi 0, %s49
    %s64 = sphi 0, %s50
    %s68 = sphi 0, %s68
    %s70 = sphi 0, %s68
    %s71 = sphi 0, %s70
    %s85 = sphi 0, %s71
    %s89 = sphi 0, %s89
    %s91 = sphi 0, %s89
    %s92 = sphi 0, %s91
    %s106 = sphi 0, %s92
    %s110 = sphi 0, %s110
    %s112 = sphi 0, %s110
    %s113 = sphi 0, %s112
    %s127 = sphi 0, %s113
    %s131 = sphi 0, %s131
    %s133 = sphi 0, %s131
    %s134 = sphi 0, %s133
    %s148 = sphi 0, %s134
    %s152 = sphi 0, %s152
    %s154 = sphi 0, %s152
    %s155 = sphi 0, %s154
    %s169 = sphi 0, %s155
    %s175 = sphi 0, %s177
    %s178 = sphi 0, %s175
    %s179 = sphi 0, %s178
    %s195 = sphi 0, %s179
  $region4: #{_lambda_.5} parent=0 // loop_header_branch
    %16 = sbr.rel (%p14) target = $region8
  $region5: #{_lambda_.5} parent=0 // loop_body
    %s18 = ssub.s32 %s13, 1
    %s19 = ssub.s32 %s13, 2
    %s20 = sadd.s32 %s13, 1
    %s21 = ssub.s32 %s13, %s20
    %p22 = scmp.eq.s32.totalorder %s21, 0
    %s24 = sadd.s32 %s23, 1
    %s25 = scalar_select %p22, %s23, %s24
    %p28 = pneg %p22
    %p29 = scmp.eq.s32.totalorder %s13, 1
    %p30 = por %p28, %p29
    %p31 = scmp.ne.s32.totalorder %s23, %s26
    %p32 = scmp.eq.s32.totalorder %s13, 0
    %p33 = por %p31, %p32
    %p34 = scmp.ne.s32.totalorder %s23, %s26
    %p35 = scmp.eq.s32.totalorder %s18, 1
    %p36 = por %p34, %p35
    %p37 = scmp.ne.s32.totalorder %s26, %s27
    %p38 = scmp.eq.s32.totalorder %s18, 0
    %p39 = por %p37, %p38
    %p40 = scmp.ne.s32.totalorder %s26, %s27
    %p41 = scmp.eq.s32.totalorder %s19, 1
    %p42 = por %p40, %p41
    %p44 = scmp.ne.s32.totalorder %s27, %s43
    %p45 = scmp.eq.s32.totalorder %s19, 0
    %p46 = por %p44, %p45
    %s48 = sadd.s32 %s47, 1
    %p51 = scmp.eq.s32.totalorder %s13, 1
    %p52 = scmp.ne.s32.totalorder %s47, %s49
    %p53 = scmp.eq.s32.totalorder %s13, 0
    %p54 = por %p52, %p53
    %p55 = scmp.ne.s32.totalorder %s47, %s49
    %p56 = scmp.eq.s32.totalorder %s18, 1
    %p57 = por %p55, %p56
    %p58 = scmp.ne.s32.totalorder %s49, %s50
    %p59 = scmp.eq.s32.totalorder %s18, 0
    %p60 = por %p58, %p59
    %p61 = scmp.ne.s32.totalorder %s49, %s50
    %p62 = scmp.eq.s32.totalorder %s19, 1
    %p63 = por %p61, %p62
    %p65 = scmp.ne.s32.totalorder %s50, %s64
    %p66 = scmp.eq.s32.totalorder %s19, 0
    %p67 = por %p65, %p66
    %s69 = sadd.s32 %s68, 1
    %p72 = scmp.eq.s32.totalorder %s13, 1
    %p73 = scmp.ne.s32.totalorder %s68, %s70
    %p74 = scmp.eq.s32.totalorder %s13, 0
    %p75 = por %p73, %p74
    %p76 = scmp.ne.s32.totalorder %s68, %s70
    %p77 = scmp.eq.s32.totalorder %s18, 1
    %p78 = por %p76, %p77
    %p79 = scmp.ne.s32.totalorder %s70, %s71
    %p80 = scmp.eq.s32.totalorder %s18, 0
    %p81 = por %p79, %p80
    %p82 = scmp.ne.s32.totalorder %s70, %s71
    %p83 = scmp.eq.s32.totalorder %s19, 1
    %p84 = por %p82, %p83
    %p86 = scmp.ne.s32.totalorder %s71, %s85
    %p87 = scmp.eq.s32.totalorder %s19, 0
    %p88 = por %p86, %p87
    %s90 = sadd.s32 %s89, 1
    %p93 = scmp.eq.s32.totalorder %s13, 1
    %p94 = scmp.ne.s32.totalorder %s89, %s91
    %p95 = scmp.eq.s32.totalorder %s13, 0
    %p96 = por %p94, %p95
    %p97 = scmp.ne.s32.totalorder %s89, %s91
    %p98 = scmp.eq.s32.totalorder %s18, 1
    %p99 = por %p97, %p98
    %p100 = scmp.ne.s32.totalorder %s91, %s92
    %p101 = scmp.eq.s32.totalorder %s18, 0
    %p102 = por %p100, %p101
    %p103 = scmp.ne.s32.totalorder %s91, %s92
    %p104 = scmp.eq.s32.totalorder %s19, 1
    %p105 = por %p103, %p104
    %p107 = scmp.ne.s32.totalorder %s92, %s106
    %p108 = scmp.eq.s32.totalorder %s19, 0
    %p109 = por %p107, %p108
    %s111 = sadd.s32 %s110, 1
    %p114 = scmp.eq.s32.totalorder %s13, 1
    %p115 = scmp.ne.s32.totalorder %s110, %s112
    %p116 = scmp.eq.s32.totalorder %s13, 0
    %p117 = por %p115, %p116
    %p118 = scmp.ne.s32.totalorder %s110, %s112
    %p119 = scmp.eq.s32.totalorder %s18, 1
    %p120 = por %p118, %p119
    %p121 = scmp.ne.s32.totalorder %s112, %s113
    %p122 = scmp.eq.s32.totalorder %s18, 0
    %p123 = por %p121, %p122
    %p124 = scmp.ne.s32.totalorder %s112, %s113
    %p125 = scmp.eq.s32.totalorder %s19, 1
    %p126 = por %p124, %p125
    %p128 = scmp.ne.s32.totalorder %s113, %s127
    %p129 = scmp.eq.s32.totalorder %s19, 0
    %p130 = por %p128, %p129
    %s132 = sadd.s32 %s131, 1
    %p135 = scmp.eq.s32.totalorder %s13, 1
    %p136 = scmp.ne.s32.totalorder %s131, %s133
    %p137 = scmp.eq.s32.totalorder %s13, 0
    %p138 = por %p136, %p137
    %p139 = scmp.ne.s32.totalorder %s131, %s133
    %p140 = scmp.eq.s32.totalorder %s18, 1
    %p141 = por %p139, %p140
    %p142 = scmp.ne.s32.totalorder %s133, %s134
    %p143 = scmp.eq.s32.totalorder %s18, 0
    %p144 = por %p142, %p143
    %p145 = scmp.ne.s32.totalorder %s133, %s134
    %p146 = scmp.eq.s32.totalorder %s19, 1
    %p147 = por %p145, %p146
    %p149 = scmp.ne.s32.totalorder %s134, %s148
    %p150 = scmp.eq.s32.totalorder %s19, 0
    %p151 = por %p149, %p150
    %s153 = sadd.s32 %s152, 1
    %p156 = scmp.eq.s32.totalorder %s13, 1
    %p157 = scmp.ne.s32.totalorder %s152, %s154
    %p158 = scmp.eq.s32.totalorder %s13, 0
    %p159 = por %p157, %p158
    %p160 = scmp.ne.s32.totalorder %s152, %s154
    %p161 = scmp.eq.s32.totalorder %s18, 1
    %p162 = por %p160, %p161
    %p163 = scmp.ne.s32.totalorder %s154, %s155
    %p164 = scmp.eq.s32.totalorder %s18, 0
    %p165 = por %p163, %p164
    %p166 = scmp.ne.s32.totalorder %s154, %s155
    %p167 = scmp.eq.s32.totalorder %s19, 1
    %p168 = por %p166, %p167
    %p170 = scmp.ne.s32.totalorder %s155, %s169
    %p171 = scmp.eq.s32.totalorder %s19, 0
    %p172 = por %p170, %p171
    %s173 = ssub.s32 %s13, %s20
    %p174 = scmp.eq.s32.totalorder %s173, 0
    %s176 = sadd.s32 %s175, 1
    %s177 = scalar_select %p174, %s175, %s176
    %p180 = pneg %p174
    %p181 = scmp.eq.s32.totalorder %s13, 1
    %p182 = por %p180, %p181
    %p183 = scmp.ne.s32.totalorder %s175, %s178
    %p184 = scmp.eq.s32.totalorder %s13, 0
    %p185 = por %p183, %p184
    %p186 = scmp.ne.s32.totalorder %s175, %s178
    %p187 = scmp.eq.s32.totalorder %s18, 1
    %p188 = por %p186, %p187
    %p189 = scmp.ne.s32.totalorder %s178, %s179
    %p190 = scmp.eq.s32.totalorder %s18, 0
    %p191 = por %p189, %p190
    %p192 = scmp.ne.s32.totalorder %s178, %s179
    %p193 = scmp.eq.s32.totalorder %s19, 1
    %p194 = por %p192, %p193
    %p196 = scmp.ne.s32.totalorder %s179, %s195
    %p197 = scmp.eq.s32.totalorder %s19, 0
    %p198 = por %p196, %p197
    %p199 = scmp.le.s32.totalorder 1, %s13
    %p200 = scmp.lt.s32.totalorder %s13, 3
    %p201 = pnand %p199, %p200
    %p202 = pneg %p201
    // Predicated region
    $region9: #{_lambda_.5} parent=5 // pred_check
      _
    $region10: #{_lambda_.5} parent=5 // pred_check_branch
      %204 = sbr.rel (%p201) target = $region12
    $region11: #{_lambda_.5} parent=5 // pred_region
      %s205 = ssub.s32 %s13, 1
      // Predicated region
      $region13: #{_lambda_.5} parent=11 // pred_check
        %p206 = pneg %p60
      $region14: #{_lambda_.5} parent=11 // pred_check_branch
        %208 = sbr.rel (%p206) target = $region16
      $region15: #{_lambda_.5} parent=11 // pred_region
        _
      $region16: #{_lambda_.5} parent=11 // pred_fallthru
        _
      // Predicated region
      $region17: #{_lambda_.5} parent=11 // pred_check
        %p209 = pneg %p81
      $region18: #{_lambda_.5} parent=11 // pred_check_branch
        %211 = sbr.rel (%p209) target = $region20
      $region19: #{_lambda_.5} parent=11 // pred_region
        _
      $region20: #{_lambda_.5} parent=11 // pred_fallthru
        _
      // Predicated region
      $region21: #{_lambda_.5} parent=11 // pred_check
        %p212 = pneg %p102
      $region22: #{_lambda_.5} parent=11 // pred_check_branch
        %214 = sbr.rel (%p212) target = $region24
      $region23: #{_lambda_.5} parent=11 // pred_region
        _
      $region24: #{_lambda_.5} parent=11 // pred_fallthru
        _
      // Predicated region
      $region25: #{_lambda_.5} parent=11 // pred_check
        %p215 = pneg %p123
      $region26: #{_lambda_.5} parent=11 // pred_check_branch
        %217 = sbr.rel (%p215) target = $region28
      $region27: #{_lambda_.5} parent=11 // pred_region
        _
      $region28: #{_lambda_.5} parent=11 // pred_fallthru
        _
      // Predicated region
      $region29: #{_lambda_.5} parent=11 // pred_check
        %p218 = pneg %p144
      $region30: #{_lambda_.5} parent=11 // pred_check_branch
        %220 = sbr.rel (%p218) target = $region32
      $region31: #{_lambda_.5} parent=11 // pred_region
        _
      $region32: #{_lambda_.5} parent=11 // pred_fallthru
        _
      // Predicated region
      $region33: #{_lambda_.5} parent=11 // pred_check
        %p221 = pneg %p165
      $region34: #{_lambda_.5} parent=11 // pred_check_branch
        %223 = sbr.rel (%p221) target = $region36
      $region35: #{_lambda_.5} parent=11 // pred_region
        _
      $region36: #{_lambda_.5} parent=11 // pred_fallthru
        _
    $region12: #{_lambda_.5} parent=5 // pred_fallthru
      _
    %p224 = scmp.lt.s32.totalorder %s13, 2
    // Predicated region
    $region37: #{_lambda_.5} parent=5 // pred_check
      %p225 = pneg %p224
    $region38: #{_lambda_.5} parent=5 // pred_check_branch
      %227 = sbr.rel (%p225) target = $region40
    $region39: #{_lambda_.5} parent=5 // pred_region
      // Predicated region
      $region41: #{_lambda_.5} parent=39 // pred_check
        %p228 = pneg %p33
      $region42: #{_lambda_.5} parent=39 // pred_check_branch
        %230 = sbr.rel (%p228) target = $region44
      $region43: #{_lambda_.5} parent=39 // pred_region
        %p231 = scmp.lt.s32.totalorder %s13, 1
        %s232 = scalar_select %p231, %s13, 1
        %s233 = smul.addr %s232, 8
        %s234 = scalar_lea.vmem %s0, %s233
      $region44: #{_lambda_.5} parent=39 // pred_fallthru
        _
    $region40: #{_lambda_.5} parent=5 // pred_fallthru
      _
    %p235 = scmp.le.s32.totalorder 1, %s13
    %p236 = scmp.lt.s32.totalorder %s13, 3
    %p237 = pnand %p235, %p236
    %p238 = pneg %p237
    // Predicated region
    $region45: #{_lambda_.5} parent=5 // pred_check
      _
    $region46: #{_lambda_.5} parent=5 // pred_check_branch
      %240 = sbr.rel (%p237) target = $region48
    $region47: #{_lambda_.5} parent=5 // pred_region
      %s241 = ssub.s32 %s13, 1
      %p242 = scmp.lt.s32.totalorder %s18, 1
      %s243 = scalar_select %p242, %s18, 1
      %s244 = smul.addr %s243, 8
      %s245 = scalar_lea.vmem %s0, %s244
      %p246 = pneg %p39
      %p247 = pneg %p36
      %p248 = pneg %p60
      %p249 = pneg %p57
      %p250 = pneg %p81
      %p251 = pneg %p78
      %p252 = pneg %p102
      %p253 = pneg %p99
      %p254 = pneg %p123
      %p255 = pneg %p120
      %p256 = pneg %p144
      %p257 = pneg %p141
      %p258 = pneg %p165
      %p259 = pneg %p162
      %p260 = pneg %p191
      %p261 = pneg %p188
      %p262 = scmp.lt.s32.totalorder %s18, 1
      %s263 = scalar_select %p262, %s18, 1
      %s264 = smul.addr %s263, 8
      %s265 = scalar_lea.vmem %s7, %s264
      %p266 = scmp.lt.s32.totalorder %s18, 1
      %s267 = scalar_select %p266, %s18, 1
      %s268 = smul.addr %s267, 8
      %s269 = scalar_lea.vmem %s0, %s268
      %p270 = scmp.lt.s32.totalorder %s18, 1
      %s271 = scalar_select %p270, %s18, 1
      %s272 = smul.addr %s271, 8
      %s273 = scalar_lea.vmem %s7, %s272
      %v274 = vld [vmem:[%s269] sm:$0xff]
      %v275 = vld [vmem:[%s1] sm:$0x1]
      %v276 = vld [vmem:[%s2] sm:$0x1]
      %vm277 = vcmask 261120
      %v278 = vsel %vm277, %v274, 0.0
      %279 = vadd.xlane.f32.xlu0 %v278
      %v280 = vpop.xlane.xlu0 %279
      %v281 = vrcp.pop 32.0
      %v282 = vmul.f32 %v280, %v281
      %v283 = vsub.f32 %v274, %v282
      %v284 = vmul.f32 %v283, %v283
      %v285 = vsel %vm277, %v284, 0.0
      %286 = vadd.xlane.f32.xlu0 %v285
      %v287 = vpop.xlane.xlu0 %286
      %v288 = vmul.f32 %v287, %v281
      %v289 = vadd.f32 %v288, 1e-05
      %v290 = vrsqrt.pop %v289
      %v291 = vmul.f32 %v283, %v290
      %v293 = vlaneseq
      %v294 = vshrl.u32 %v293, 7
      %v295 = vsub.s32 0, %v294
      %v296 = vrot.slane %v275, %v295
      %v298 = vmul.f32 %v291, %v296
      %v300 = vlaneseq
      %v301 = vshrl.u32 %v300, 7
      %v302 = vsub.s32 0, %v301
      %v303 = vrot.slane %v276, %v302
      %v305 = vadd.f32 %v298, %v303
      %v306 = vld [vmem:[%s3] sm:$0xff]
      %v307 = vld [vmem:[%s3 + $0x8] sm:$0xff]
      %v308 = vld [vmem:[%s3 + $0x10] sm:$0xff]
      %v309 = vld [vmem:[%s3 + $0x18] sm:$0xff]
      %v310 = vld [vmem:[%s4] sm:$0x1]
      %v312 = vlaneseq
      %v313 = vshrl.u32 %v312, 7
      %v314 = vsub.s32 0, %v313
      %v315 = vrot.slane %v310, %v314
      %v318 = vsel %vm277, %v305, 0
      %320 = vmatprep.subr.mxu0 0.0
      %321 = vmatpush1.msra.mxu0 %v306
      %322 = vmatprep.subr.mxu0 0.0
      %323 = vmatpush1.msra.mxu0 %v307
      %324 = vmatprep.subr.mxu0 0.0
      %325 = vmatpush1.msra.mxu0 %v308
      %326 = vmatprep.subr.mxu0 0.0
      %327 = vmatpush1.msra.mxu0 %v309
      %328 = vmatprep.subr.mxu0 0.0
      %329 = vmatpush1.msra.mxu0 0.0
      %330 = vmatprep.subr.mxu0 0.0
      %331 = vmatpush1.msra.mxu0 0.0
      %332 = vmatprep.subr.mxu0 0.0
      %333 = vmatpush1.msra.mxu0 0.0
      %334 = vmatprep.subr.mxu0 0.0
      %335 = vmatpush1.msra.mxu0 0.0
      %336 = vmatprep.subr.mxu0 0.0
      %337 = vmatpush1.msra.mxu0 0.0
      %338 = vmatprep.subr.mxu0 0.0
      %339 = vmatpush1.msra.mxu0 0.0
      %340 = vmatprep.subr.mxu0 0.0
      %341 = vmatpush1.msra.mxu0 0.0
      %342 = vmatprep.subr.mxu0 0.0
      %343 = vmatpush1.msra.mxu0 0.0
      %344 = vmatprep.subr.mxu0 0.0
      %345 = vmatpush1.msra.mxu0 0.0
      %346 = vmatprep.subr.mxu0 0.0
      %347 = vmatpush1.msra.mxu0 0.0
      %348 = vmatprep.subr.mxu0 0.0
      %349 = vmatpush1.msra.mxu0 0.0
      %350 = vmatprep.subr.mxu0 0.0
      %351 = vmatpush1.msra.mxu0 0.0
      %352 = vmatprep.subr.mxu0 0.0
      %353 = vmatpush1.msra.mxu0 0.0
      %354 = vmatprep.subr.mxu0 0.0
      %355 = vmatpush1.msra.mxu0 0.0
      %356 = vmatprep.subr.mxu0 0.0
      %357 = vmatpush1.msra.mxu0 0.0
      %358 = vmatprep.subr.mxu0 0.0
      %359 = vmatpush1.msra.mxu0 0.0
      %360 = vmatprep.subr.mxu0 0.0
      %361 = vmatpush1.msra.mxu0 0.0
      %362 = vmatprep.subr.mxu0 0.0
      %363 = vmatpush1.msra.mxu0 0.0
      %364 = vmatprep.subr.mxu0 0.0
      %365 = vmatpush1.msra.mxu0 0.0
      %366 = vmatprep.subr.mxu0 0.0
      %367 = vmatpush1.msra.mxu0 0.0
      %368 = vmatprep.subr.mxu0 0.0
      %369 = vmatpush1.msra.mxu0 0.0
      %370 = vmatprep.subr.mxu0 0.0
      %371 = vmatpush1.msra.mxu0 0.0
      %372 = vmatprep.subr.mxu0 0.0
      %373 = vmatpush1.msra.mxu0 0.0
      %374 = vmatprep.subr.mxu0 0.0
      %375 = vmatpush1.msra.mxu0 0.0
      %376 = vmatprep.subr.mxu0 0.0
      %377 = vmatpush1.msra.mxu0 0.0
      %378 = vmatprep.subr.mxu0 0.0
      %379 = vmatpush1.msra.mxu0 0.0
      %380 = vmatprep.subr.mxu0 0.0
      %381 = vmatpush1.msra.mxu0 0.0
      %382 = vmatprep.subr.mxu0 0.0
      %383 = vmatpush1.msra.mxu0 0.0
      %384 = vmatprep.mubr.f32.mxu0 0.0
      %385 = vmatmul.mubr.f32.gmra.mrb[0].mxu0 %v318
      %v386 = vpop.f32.mrb[0].mxu0
      %v387 = vadd.f32 %v315, %v386
      %v388 = vpop.f32.mrb[0].mxu0
      %389 = vdwg.mxu0
      %v390 = vlaneseq
      %v391 = vshrl.u32 %v390, 7
      %v392 = vlaneseq
      %v393 = vand.u32 %v392, 127
      %vm394 = vcmp.le.s32.totalorder %v393, %v391
      %396 = vrot.lane.b32.xlu0 %v387, 96
      %v397 = vpop.permute.xlu0 %396
      %vm398 = vcmask 130048
      %v399 = vsel %vm398, %v387, 0
      %v401 = vsel %vm398, %v397, 0
      %403 = vmatprep.subr.mxu0 0.0
      %404 = vmatpush1.xpose.msra.mxu0 %v401
      %405 = vmatprep.subr.mxu0 0.0
      %406 = vmatpush1.xpose.msra.mxu0 0.0
      %407 = vmatprep.subr.mxu0 0.0
      %408 = vmatpush1.xpose.msra.mxu0 0.0
      %409 = vmatprep.subr.mxu0 0.0
      %410 = vmatpush1.xpose.msra.mxu0 0.0
      %411 = vmatprep.subr.mxu0 0.0
      %412 = vmatpush1.xpose.msra.mxu0 0.0
      %413 = vmatprep.subr.mxu0 0.0
      %414 = vmatpush1.xpose.msra.mxu0 0.0
      %415 = vmatprep.subr.mxu0 0.0
      %416 = vmatpush1.xpose.msra.mxu0 0.0
      %417 = vmatprep.subr.mxu0 0.0
      %418 = vmatpush1.xpose.msra.mxu0 0.0
      %419 = vmatprep.subr.mxu0 0.0
      %420 = vmatpush1.xpose.msra.mxu0 0.0
      %421 = vmatprep.subr.mxu0 0.0
      %422 = vmatpush1.xpose.msra.mxu0 0.0
      %423 = vmatprep.subr.mxu0 0.0
      %424 = vmatpush1.xpose.msra.mxu0 0.0
      %425 = vmatprep.subr.mxu0 0.0
      %426 = vmatpush1.xpose.msra.mxu0 0.0
      %427 = vmatprep.subr.mxu0 0.0
      %428 = vmatpush1.xpose.msra.mxu0 0.0
      %429 = vmatprep.subr.mxu0 0.0
      %430 = vmatpush1.xpose.msra.mxu0 0.0
      %431 = vmatprep.subr.mxu0 0.0
      %432 = vmatpush1.xpose.msra.mxu0 0.0
      %433 = vmatprep.subr.mxu0 0.0
      %434 = vmatpush1.xpose.msra.mxu0 0.0
      %435 = vmatprep.subr.mxu0 0.0
      %436 = vmatpush1.xpose.msra.mxu0 0.0
      %437 = vmatprep.subr.mxu0 0.0
      %438 = vmatpush1.xpose.msra.mxu0 0.0
      %439 = vmatprep.subr.mxu0 0.0
      %440 = vmatpush1.xpose.msra.mxu0 0.0
      %441 = vmatprep.subr.mxu0 0.0
      %442 = vmatpush1.xpose.msra.mxu0 0.0
      %443 = vmatprep.subr.mxu0 0.0
      %444 = vmatpush1.xpose.msra.mxu0 0.0
      %445 = vmatprep.subr.mxu0 0.0
      %446 = vmatpush1.xpose.msra.mxu0 0.0
      %447 = vmatprep.subr.mxu0 0.0
      %448 = vmatpush1.xpose.msra.mxu0 0.0
      %449 = vmatprep.subr.mxu0 0.0
      %450 = vmatpush1.xpose.msra.mxu0 0.0
      %451 = vmatprep.subr.mxu0 0.0
      %452 = vmatpush1.xpose.msra.mxu0 0.0
      %453 = vmatprep.subr.mxu0 0.0
      %454 = vmatpush1.xpose.msra.mxu0 0.0
      %455 = vmatprep.subr.mxu0 0.0
      %456 = vmatpush1.xpose.msra.mxu0 0.0
      %457 = vmatprep.subr.mxu0 0.0
      %458 = vmatpush1.xpose.msra.mxu0 0.0
      %459 = vmatprep.subr.mxu0 0.0
      %460 = vmatpush1.xpose.msra.mxu0 0.0
      %461 = vmatprep.subr.mxu0 0.0
      %462 = vmatpush1.xpose.msra.mxu0 0.0
      %463 = vmatprep.subr.mxu0 0.0
      %464 = vmatpush1.xpose.msra.mxu0 0.0
      %465 = vmatprep.subr.mxu0 0.0
      %466 = vmatpush1.xpose.msra.mxu0 0.0
      %467 = vmatprep.mubr.f32.mxu0 0.0
      %468 = vmatmul.mubr.f32.gmra.mrb[0].mxu0 %v399
      %v469 = vpop.f32.mrb[0].mxu0
      %v470 = vadd.f32 0.0, %v469
      %v471 = vpop.f32.mrb[0].mxu0
      %472 = vdwg.mxu0
      %v473 = vmul.f32 %v470, 0.25
      %v474 = vsel %vm394, %v473, -inf
      %vm475 = vcmask 64512
      %v476 = vsel %vm475, %v474, -inf
      %477 = vmax.xlane.f32.xlu0 %v476
      %v478 = vpop.xlane.xlu0 %477
      %v479 = vsub.f32 %v474, %v478
      %v480 = vmul.f32 %v479, 1.442695
      %v481 = vpow.pop %v480
      %v482 = vsel %vm475, %v481, 0.0
      %483 = vadd.xlane.f32.xlu0 %v482
      %v484 = vpop.xlane.xlu0 %483
      %v485 = vrcp.pop %v484
      %v486 = vmul.f32 %v481, %v485
      %487 = vrot.lane.b32.xlu0 %v387, 64
      %v488 = vpop.permute.xlu0 %487
      %v491 = vsel %vm475, %v486, 0
      %493 = vmatprep.subr.mxu0 0.0
      %494 = vmatpush1.msra.mxu0 %v488
      %495 = vmatprep.subr.mxu0 0.0
      %496 = vmatpush1.msra.mxu0 0.0
      %497 = vmatprep.subr.mxu0 0.0
      %498 = vmatpush1.msra.mxu0 0.0
      %499 = vmatprep.subr.mxu0 0.0
      %500 = vmatpush1.msra.mxu0 0.0
      %501 = vmatprep.subr.mxu0 0.0
      %502 = vmatpush1.msra.mxu0 0.0
      %503 = vmatprep.subr.mxu0 0.0
      %504 = vmatpush1.msra.mxu0 0.0
      %505 = vmatprep.subr.mxu0 0.0
      %506 = vmatpush1.msra.mxu0 0.0
      %507 = vmatprep.subr.mxu0 0.0
      %508 = vmatpush1.msra.mxu0 0.0
      %509 = vmatprep.subr.mxu0 0.0
      %510 = vmatpush1.msra.mxu0 0.0
      %511 = vmatprep.subr.mxu0 0.0
      %512 = vmatpush1.msra.mxu0 0.0
      %513 = vmatprep.subr.mxu0 0.0
      %514 = vmatpush1.msra.mxu0 0.0
      %515 = vmatprep.subr.mxu0 0.0
      %516 = vmatpush1.msra.mxu0 0.0
      %517 = vmatprep.subr.mxu0 0.0
      %518 = vmatpush1.msra.mxu0 0.0
      %519 = vmatprep.subr.mxu0 0.0
      %520 = vmatpush1.msra.mxu0 0.0
      %521 = vmatprep.subr.mxu0 0.0
      %522 = vmatpush1.msra.mxu0 0.0
      %523 = vmatprep.subr.mxu0 0.0
      %524 = vmatpush1.msra.mxu0 0.0
      %525 = vmatprep.subr.mxu0 0.0
      %526 = vmatpush1.msra.mxu0 0.0
      %527 = vmatprep.subr.mxu0 0.0
      %528 = vmatpush1.msra.mxu0 0.0
      %529 = vmatprep.subr.mxu0 0.0
      %530 = vmatpush1.msra.mxu0 0.0
      %531 = vmatprep.subr.mxu0 0.0
      %532 = vmatpush1.msra.mxu0 0.0
      %533 = vmatprep.subr.mxu0 0.0
      %534 = vmatpush1.msra.mxu0 0.0
      %535 = vmatprep.subr.mxu0 0.0
      %536 = vmatpush1.msra.mxu0 0.0
      %537 = vmatprep.subr.mxu0 0.0
      %538 = vmatpush1.msra.mxu0 0.0
      %539 = vmatprep.subr.mxu0 0.0
      %540 = vmatpush1.msra.mxu0 0.0
      %541 = vmatprep.subr.mxu0 0.0
      %542 = vmatpush1.msra.mxu0 0.0
      %543 = vmatprep.subr.mxu0 0.0
      %544 = vmatpush1.msra.mxu0 0.0
      %545 = vmatprep.subr.mxu0 0.0
      %546 = vmatpush1.msra.mxu0 0.0
      %547 = vmatprep.subr.mxu0 0.0
      %548 = vmatpush1.msra.mxu0 0.0
      %549 = vmatprep.subr.mxu0 0.0
      %550 = vmatpush1.msra.mxu0 0.0
      %551 = vmatprep.subr.mxu0 0.0
      %552 = vmatpush1.msra.mxu0 0.0
      %553 = vmatprep.subr.mxu0 0.0
      %554 = vmatpush1.msra.mxu0 0.0
      %555 = vmatprep.subr.mxu0 0.0
      %556 = vmatpush1.msra.mxu0 0.0
      %557 = vmatprep.mubr.f32.mxu0 0.0
      %558 = vmatmul.mubr.f32.gmra.mrb[0].mxu0 %v491
      %v559 = vpop.f32.mrb[0].mxu0
      %v560 = vadd.f32 0.0, %v559
      %v561 = vpop.f32.mrb[0].mxu0
      %562 = vdwg.mxu0
      %563 = vrot.lane.b32.xlu0 %v387, 112
      %v564 = vpop.permute.xlu0 %563
      %565 = vrot.lane.b32.xlu0 %v387, 80
      %v566 = vpop.permute.xlu0 %565
      %v567 = vsel %vm398, %v564, 0
      %v569 = vsel %vm398, %v566, 0
      %571 = vmatprep.subr.mxu0 0.0
      %572 = vmatpush1.xpose.msra.mxu0 %v569
      %573 = vmatprep.subr.mxu0 0.0
      %574 = vmatpush1.xpose.msra.mxu0 0.0
      %575 = vmatprep.subr.mxu0 0.0
      %576 = vmatpush1.xpose.msra.mxu0 0.0
      %577 = vmatprep.subr.mxu0 0.0
      %578 = vmatpush1.xpose.msra.mxu0 0.0
      %579 = vmatprep.subr.mxu0 0.0
      %580 = vmatpush1.xpose.msra.mxu0 0.0
      %581 = vmatprep.subr.mxu0 0.0
      %582 = vmatpush1.xpose.msra.mxu0 0.0
      %583 = vmatprep.subr.mxu0 0.0
      %584 = vmatpush1.xpose.msra.mxu0 0.0
      %585 = vmatprep.subr.mxu0 0.0
      %586 = vmatpush1.xpose.msra.mxu0 0.0
      %587 = vmatprep.subr.mxu0 0.0
      %588 = vmatpush1.xpose.msra.mxu0 0.0
      %589 = vmatprep.subr.mxu0 0.0
      %590 = vmatpush1.xpose.msra.mxu0 0.0
      %591 = vmatprep.subr.mxu0 0.0
      %592 = vmatpush1.xpose.msra.mxu0 0.0
      %593 = vmatprep.subr.mxu0 0.0
      %594 = vmatpush1.xpose.msra.mxu0 0.0
      %595 = vmatprep.subr.mxu0 0.0
      %596 = vmatpush1.xpose.msra.mxu0 0.0
      %597 = vmatprep.subr.mxu0 0.0
      %598 = vmatpush1.xpose.msra.mxu0 0.0
      %599 = vmatprep.subr.mxu0 0.0
      %600 = vmatpush1.xpose.msra.mxu0 0.0
      %601 = vmatprep.subr.mxu0 0.0
      %602 = vmatpush1.xpose.msra.mxu0 0.0
      %603 = vmatprep.subr.mxu0 0.0
      %604 = vmatpush1.xpose.msra.mxu0 0.0
      %605 = vmatprep.subr.mxu0 0.0
      %606 = vmatpush1.xpose.msra.mxu0 0.0
      %607 = vmatprep.subr.mxu0 0.0
      %608 = vmatpush1.xpose.msra.mxu0 0.0
      %609 = vmatprep.subr.mxu0 0.0
      %610 = vmatpush1.xpose.msra.mxu0 0.0
      %611 = vmatprep.subr.mxu0 0.0
      %612 = vmatpush1.xpose.msra.mxu0 0.0
      %613 = vmatprep.subr.mxu0 0.0
      %614 = vmatpush1.xpose.msra.mxu0 0.0
      %615 = vmatprep.subr.mxu0 0.0
      %616 = vmatpush1.xpose.msra.mxu0 0.0
      %617 = vmatprep.subr.mxu0 0.0
      %618 = vmatpush1.xpose.msra.mxu0 0.0
      %619 = vmatprep.subr.mxu0 0.0
      %620 = vmatpush1.xpose.msra.mxu0 0.0
      %621 = vmatprep.subr.mxu0 0.0
      %622 = vmatpush1.xpose.msra.mxu0 0.0
      %623 = vmatprep.subr.mxu0 0.0
      %624 = vmatpush1.xpose.msra.mxu0 0.0
      %625 = vmatprep.subr.mxu0 0.0
      %626 = vmatpush1.xpose.msra.mxu0 0.0
      %627 = vmatprep.subr.mxu0 0.0
      %628 = vmatpush1.xpose.msra.mxu0 0.0
      %629 = vmatprep.subr.mxu0 0.0
      %630 = vmatpush1.xpose.msra.mxu0 0.0
      %631 = vmatprep.subr.mxu0 0.0
      %632 = vmatpush1.xpose.msra.mxu0 0.0
      %633 = vmatprep.subr.mxu0 0.0
      %634 = vmatpush1.xpose.msra.mxu0 0.0
      %635 = vmatprep.mubr.f32.mxu0 0.0
      %636 = vmatmul.mubr.f32.gmra.mrb[0].mxu0 %v567
      %v637 = vpop.f32.mrb[0].mxu0
      %v638 = vadd.f32 0.0, %v637
      %v639 = vpop.f32.mrb[0].mxu0
      %640 = vdwg.mxu0
      %v641 = vmul.f32 %v638, 0.25
      %v642 = vsel %vm394, %v641, -inf
      %v643 = vsel %vm475, %v642, -inf
      %644 = vmax.xlane.f32.xlu0 %v643
      %v645 = vpop.xlane.xlu0 %644
      %v646 = vsub.f32 %v642, %v645
      %v647 = vmul.f32 %v646, 1.442695
      %v648 = vpow.pop %v647
      %v649 = vsel %vm475, %v648, 0.0
      %650 = vadd.xlane.f32.xlu0 %v649
      %v651 = vpop.xlane.xlu0 %650
      %v652 = vrcp.pop %v651
      %v653 = vmul.f32 %v648, %v652
      %654 = vrot.lane.b32.xlu0 %v387, 48
      %v655 = vpop.permute.xlu0 %654
      %v658 = vsel %vm475, %v653, 0
      %660 = vmatprep.subr.mxu0 0.0
      %661 = vmatpush1.msra.mxu0 %v655
      %662 = vmatprep.subr.mxu0 0.0
      %663 = vmatpush1.msra.mxu0 0.0
      %664 = vmatprep.subr.mxu0 0.0
      %665 = vmatpush1.msra.mxu0 0.0
      %666 = vmatprep.subr.mxu0 0.0
      %667 = vmatpush1.msra.mxu0 0.0
      %668 = vmatprep.subr.mxu0 0.0
      %669 = vmatpush1.msra.mxu0 0.0
      %670 = vmatprep.subr.mxu0 0.0
      %671 = vmatpush1.msra.mxu0 0.0
      %672 = vmatprep.subr.mxu0 0.0
      %673 = vmatpush1.msra.mxu0 0.0
      %674 = vmatprep.subr.mxu0 0.0
      %675 = vmatpush1.msra.mxu0 0.0
      %676 = vmatprep.subr.mxu0 0.0
      %677 = vmatpush1.msra.mxu0 0.0
      %678 = vmatprep.subr.mxu0 0.0
      %679 = vmatpush1.msra.mxu0 0.0
      %680 = vmatprep.subr.mxu0 0.0
      %681 = vmatpush1.msra.mxu0 0.0
      %682 = vmatprep.subr.mxu0 0.0
      %683 = vmatpush1.msra.mxu0 0.0
      %684 = vmatprep.subr.mxu0 0.0
      %685 = vmatpush1.msra.mxu0 0.0
      %686 = vmatprep.subr.mxu0 0.0
      %687 = vmatpush1.msra.mxu0 0.0
      %688 = vmatprep.subr.mxu0 0.0
      %689 = vmatpush1.msra.mxu0 0.0
      %690 = vmatprep.subr.mxu0 0.0
      %691 = vmatpush1.msra.mxu0 0.0
      %692 = vmatprep.subr.mxu0 0.0
      %693 = vmatpush1.msra.mxu0 0.0
      %694 = vmatprep.subr.mxu0 0.0
      %695 = vmatpush1.msra.mxu0 0.0
      %696 = vmatprep.subr.mxu0 0.0
      %697 = vmatpush1.msra.mxu0 0.0
      %698 = vmatprep.subr.mxu0 0.0
      %699 = vmatpush1.msra.mxu0 0.0
      %700 = vmatprep.subr.mxu0 0.0
      %701 = vmatpush1.msra.mxu0 0.0
      %702 = vmatprep.subr.mxu0 0.0
      %703 = vmatpush1.msra.mxu0 0.0
      %704 = vmatprep.subr.mxu0 0.0
      %705 = vmatpush1.msra.mxu0 0.0
      %706 = vmatprep.subr.mxu0 0.0
      %707 = vmatpush1.msra.mxu0 0.0
      %708 = vmatprep.subr.mxu0 0.0
      %709 = vmatpush1.msra.mxu0 0.0
      %710 = vmatprep.subr.mxu0 0.0
      %711 = vmatpush1.msra.mxu0 0.0
      %712 = vmatprep.subr.mxu0 0.0
      %713 = vmatpush1.msra.mxu0 0.0
      %714 = vmatprep.subr.mxu0 0.0
      %715 = vmatpush1.msra.mxu0 0.0
      %716 = vmatprep.subr.mxu0 0.0
      %717 = vmatpush1.msra.mxu0 0.0
      %718 = vmatprep.subr.mxu0 0.0
      %719 = vmatpush1.msra.mxu0 0.0
      %720 = vmatprep.subr.mxu0 0.0
      %721 = vmatpush1.msra.mxu0 0.0
      %722 = vmatprep.subr.mxu0 0.0
      %723 = vmatpush1.msra.mxu0 0.0
      %724 = vmatprep.mubr.f32.mxu0 0.0
      %725 = vmatmul.mubr.f32.gmra.mrb[0].mxu0 %v658
      %v726 = vpop.f32.mrb[0].mxu0
      %v727 = vadd.f32 0.0, %v726
      %v728 = vpop.f32.mrb[0].mxu0
      %729 = vdwg.mxu0
      %731 = vrot.lane.b32.xlu0 %v727, 16
      %v732 = vpop.permute.xlu0 %731
      %v734 = vsel %vm398, %v560, %v732
      %v735 = vld [vmem:[%s5] sm:$0xff]
      %v736 = vld [vmem:[%s5 + $0x8] sm:$0xff]
      %v737 = vld [vmem:[%s5 + $0x10] sm:$0xff]
      %v738 = vld [vmem:[%s5 + $0x18] sm:$0xff]
      %v739 = vld [vmem:[%s6] sm:$0x1]
      %v741 = vlaneseq
      %v742 = vshrl.u32 %v741, 7
      %v743 = vsub.s32 0, %v742
      %v744 = vrot.slane %v739, %v743
      %v747 = vsel %vm277, %v734, 0
      %749 = vmatprep.subr.mxu0 0.0
      %750 = vmatpush1.msra.mxu0 %v735
      %751 = vmatprep.subr.mxu0 0.0
      %752 = vmatpush1.msra.mxu0 %v736
      %753 = vmatprep.subr.mxu0 0.0
      %754 = vmatpush1.msra.mxu0 %v737
      %755 = vmatprep.subr.mxu0 0.0
      %756 = vmatpush1.msra.mxu0 %v738
      %757 = vmatprep.subr.mxu0 0.0
      %758 = vmatpush1.msra.mxu0 0.0
      %759 = vmatprep.subr.mxu0 0.0
      %760 = vmatpush1.msra.mxu0 0.0
      %761 = vmatprep.subr.mxu0 0.0
      %762 = vmatpush1.msra.mxu0 0.0
      %763 = vmatprep.subr.mxu0 0.0
      %764 = vmatpush1.msra.mxu0 0.0
      %765 = vmatprep.subr.mxu0 0.0
      %766 = vmatpush1.msra.mxu0 0.0
      %767 = vmatprep.subr.mxu0 0.0
      %768 = vmatpush1.msra.mxu0 0.0
      %769 = vmatprep.subr.mxu0 0.0
      %770 = vmatpush1.msra.mxu0 0.0
      %771 = vmatprep.subr.mxu0 0.0
      %772 = vmatpush1.msra.mxu0 0.0
      %773 = vmatprep.subr.mxu0 0.0
      %774 = vmatpush1.msra.mxu0 0.0
      %775 = vmatprep.subr.mxu0 0.0
      %776 = vmatpush1.msra.mxu0 0.0
      %777 = vmatprep.subr.mxu0 0.0
      %778 = vmatpush1.msra.mxu0 0.0
      %779 = vmatprep.subr.mxu0 0.0
      %780 = vmatpush1.msra.mxu0 0.0
      %781 = vmatprep.subr.mxu0 0.0
      %782 = vmatpush1.msra.mxu0 0.0
      %783 = vmatprep.subr.mxu0 0.0
      %784 = vmatpush1.msra.mxu0 0.0
      %785 = vmatprep.subr.mxu0 0.0
      %786 = vmatpush1.msra.mxu0 0.0
      %787 = vmatprep.subr.mxu0 0.0
      %788 = vmatpush1.msra.mxu0 0.0
      %789 = vmatprep.subr.mxu0 0.0
      %790 = vmatpush1.msra.mxu0 0.0
      %791 = vmatprep.subr.mxu0 0.0
      %792 = vmatpush1.msra.mxu0 0.0
      %793 = vmatprep.subr.mxu0 0.0
      %794 = vmatpush1.msra.mxu0 0.0
      %795 = vmatprep.subr.mxu0 0.0
      %796 = vmatpush1.msra.mxu0 0.0
      %797 = vmatprep.subr.mxu0 0.0
      %798 = vmatpush1.msra.mxu0 0.0
      %799 = vmatprep.subr.mxu0 0.0
      %800 = vmatpush1.msra.mxu0 0.0
      %801 = vmatprep.subr.mxu0 0.0
      %802 = vmatpush1.msra.mxu0 0.0
      %803 = vmatprep.subr.mxu0 0.0
      %804 = vmatpush1.msra.mxu0 0.0
      %805 = vmatprep.subr.mxu0 0.0
      %806 = vmatpush1.msra.mxu0 0.0
      %807 = vmatprep.subr.mxu0 0.0
      %808 = vmatpush1.msra.mxu0 0.0
      %809 = vmatprep.subr.mxu0 0.0
      %810 = vmatpush1.msra.mxu0 0.0
      %811 = vmatprep.subr.mxu0 0.0
      %812 = vmatpush1.msra.mxu0 0.0
      %813 = vmatprep.mubr.f32.mxu0 0.0
      %814 = vmatmul.mubr.f32.gmra.mrb[0].mxu0 %v747
      %v815 = vpop.f32.mrb[0].mxu0
      %v816 = vadd.f32 %v744, %v815
      %v817 = vpop.f32.mrb[0].mxu0
      %818 = vdwg.mxu0
      %v819 = vadd.f32 %v274, %v816
      %820 = vst.msk [vmem:[%s273] sm:$0xff] %vm277, %v819
      %p821 = scmp.lt.s32.totalorder %s18, 1
      %s822 = scalar_select %p821, %s18, 1
      %s823 = smul.addr %s822, 8
      %s824 = scalar_lea.vmem %s7, %s823
      // Predicated region
      $region49: #{_lambda_.5} parent=47 // pred_check
        %p825 = pneg %p188
      $region50: #{_lambda_.5} parent=47 // pred_check_branch
        %827 = sbr.rel (%p825) target = $region52
      $region51: #{_lambda_.5} parent=47 // pred_region
        _
      $region52: #{_lambda_.5} parent=47 // pred_fallthru
        _
    $region48: #{_lambda_.5} parent=5 // pred_fallthru
      _
    %p828 = scmp.le.s32.totalorder 2, %s13
    // Predicated region
    $region53: #{_lambda_.5} parent=5 // pred_check
      %p829 = pneg %p828
    $region54: #{_lambda_.5} parent=5 // pred_check_branch
      %831 = sbr.rel (%p829) target = $region56
    $region55: #{_lambda_.5} parent=5 // pred_region
      %s832 = ssub.s32 %s13, 2
      // Predicated region
      $region57: #{_lambda_.5} parent=55 // pred_check
        %p833 = pneg %p194
      $region58: #{_lambda_.5} parent=55 // pred_check_branch
        %835 = sbr.rel (%p833) target = $region60
      $region59: #{_lambda_.5} parent=55 // pred_region
        %p836 = scmp.lt.s32.totalorder %s19, 1
        %s837 = scalar_select %p836, %s19, 1
        %s838 = smul.addr %s837, 8
        %s839 = scalar_lea.vmem %s7, %s838
      $region60: #{_lambda_.5} parent=55 // pred_fallthru
        _
    $region56: #{_lambda_.5} parent=5 // pred_fallthru
      _
  $region6: #{_lambda_.5} parent=0 // loop_footer
    %s17 = sadd.s32 1, %s13
  $region7: #{_lambda_.5} parent=0 // loop_footer_branch
    %12 = sbr.rel target = $region3
  $region8: #{_lambda_.5} parent=0 // loop_exit
    _

</llo_original>
